<compile_context>
chip_gen: v5e
topology: v5e:2x2
jax: 0.10.0
libtpu: 0.0.40
codegen_flags: <defaults>
</compile_context>

<pallas_src>
import functools

import jax
import jax.numpy as jnp
from jax.experimental import pallas as pl
from jax.experimental.pallas import tpu as pltpu

_LANE = 128


def _round_up(x, m):
    return ((x + m - 1) // m) * m


def _default_vmem_limit_bytes():
    """Per-generation scoped VMEM limit: tighter on 64 MiB parts (v7x), roomier
    on 128 MiB parts (v5e / v6e)."""
    cap = None
    try:
        cap = getattr(pltpu.get_tpu_info(), "vmem_capacity_bytes", None)
    except Exception:
        cap = None
    if cap is None:
        cap = 128 * 1024 * 1024
    if cap <= 64 * 1024 * 1024:
        return 48 * 1024 * 1024
    return 96 * 1024 * 1024


def _pass2_vmem_bytes(C, thw, elt, wbytes):
    """Rough per-grid-step VMEM working set of the gate+FFN kernel."""
    est = 4 * C * thw * elt            # x in + out, double-buffered
    est += C * thw * elt               # x1
    est += 3 * C * thw * 4             # (2C, thw) hidden + (C, thw) ffn, f32
    est += 4 * 2 * C * C * wbytes      # conv1 + conv2 weights, double-buffered
    est += 2 * 4 * C * 4 + (1 << 14)   # biases / gate + slack
    return est


def _fused_vmem_bytes(C, HW, elt, wbytes, c4r):
    slab = C * HW
    est = 4 * slab * elt               # x + out, double-buffered
    est += slab * elt                  # x1
    est += 3 * slab * 4                # (2C, HW) hidden + (C, HW) ffn, f32
    est += 4 * 2 * C * C * wbytes      # conv weights, double-buffered
    est += 2 * 2 * c4r * C * 4         # SE weights, double-buffered (f32)
    est += 2 * 4 * C * 4 + (1 << 14)
    return est


def _pick_hw_tile(hw, C, elt, wbytes, max_lanes, vmem_budget):
    """Largest 128-multiple tile <= max_lanes whose pass-2 working set fits the
    VMEM budget.  No divisibility requirement: the grid uses a ceiling divide
    and the ragged edge tile is masked / discarded in-kernel."""
    cap = min(max(_LANE, (max_lanes // _LANE) * _LANE), _round_up(hw, _LANE))
    thw = cap
    while thw > _LANE and _pass2_vmem_bytes(C, thw, elt, wbytes) > vmem_budget:
        thw -= _LANE
    return thw


# ============================== kernels =====================================


def _pool_kernel(x_ref, sum_ref, acc_ref, *, hw, thw, mask_tail):
    """Global-average-pool sums.  VPU-accumulate a resident (1, C, thw) partial
    sum per tile; single cross-lane reduce only in the last-tile epilogue."""
    t = pl.program_id(1)

    @pl.when(t == 0)
    def _():
        acc_ref[...] = jnp.zeros_like(acc_ref)

    x = x_ref[...].astype(jnp.float32)
    if mask_tail:
        col = t * thw + jax.lax.broadcasted_iota(jnp.int32, x.shape, 2)
        x = jnp.where(col < hw, x, 0.0)
    acc_ref[...] += x

    @pl.when(t == pl.num_programs(1) - 1)
    def _():
        sum_ref[...] = jnp.sum(acc_ref[...], axis=-1, keepdims=True)


def _scale_ffn_kernel(x_ref, g_ref, w1_ref, b1_ref, w2_ref, b2_ref, o_ref, *, add):
    """Fused: x1 = x * gate_eff ; out = x1 (+) BN2(conv2(SiLU(BN1(conv1(x1)))))."""
    x = x_ref[0]                                       # (C, thw)
    x1 = x * g_ref[0].astype(x.dtype)                  # gate_eff already folds +1

    # 1x1 convs == channel matmuls over the (C, thw) slab -> MXU.
    h = jnp.dot(w1_ref[...], x1, preferred_element_type=jnp.float32) + b1_ref[...]
    h = h * jax.nn.sigmoid(h)                          # SiLU (EUP), f32 math
    f = (jnp.dot(w2_ref[...], h.astype(w2_ref.dtype),
                 preferred_element_type=jnp.float32) + b2_ref[...])

    out = x1 + f if add else f
    o_ref[0] = out.astype(o_ref.dtype)


def _fused_kernel(x_ref, wsq_ref, wfc_ref, w1_ref, b1_ref, w2_ref, b2_ref, o_ref,
                  *, add, inv_hw):
    """Whole PSABlock for one batch item with the (C, HW) slab resident in VMEM:
    pool + SE excitation + gate/shortcut + BN-folded FFN + residual."""
    x = x_ref[0]                                       # (C, HW)

    # -- SELayerV2: global average pool + collapsed 4-branch squeeze + excite.
    y = jnp.sum(x.astype(jnp.float32), axis=-1, keepdims=True) * inv_hw   # (C, 1)
    h = jnp.maximum(
        jnp.dot(wsq_ref[...], y, preferred_element_type=jnp.float32), 0.0)  # (4Cr,1)
    g = jax.nn.sigmoid(
        jnp.dot(wfc_ref[...], h, preferred_element_type=jnp.float32))       # (C, 1)
    g_eff = (1.0 + g) if add else g
    x1 = x * g_eff.astype(x.dtype)                     # attn branch (+ shortcut)

    # -- FFN: BN-folded 1x1 convs over the resident slab.
    hh = jnp.dot(w1_ref[...], x1, preferred_element_type=jnp.float32) + b1_ref[...]
    hh = hh * jax.nn.sigmoid(hh)                       # SiLU, f32 math
    f = (jnp.dot(w2_ref[...], hh.astype(w2_ref.dtype),
                 preferred_element_type=jnp.float32) + b2_ref[...])

    out = x1 + f if add else f
    o_ref[0] = out.astype(o_ref.dtype)


# ============================== wrapper ======================================


def psablock_forward(x_nchw, params, *, shortcut=True, bn_eps=1e-5,
                     max_tile_lanes=2048, vmem_limit_bytes=None,
                     force_two_pass=False):
    """PSABlock forward (SELayerV2 attention + 1x1-conv FFN, both residual)."""
    B, C, H, W = x_nchw.shape
    HW = H * W
    out_dtype = x_nchw.dtype
    elt = jnp.dtype(out_dtype).itemsize

    if vmem_limit_bytes is None:
        vmem_limit_bytes = _default_vmem_limit_bytes()
    vmem_budget = int(0.7 * vmem_limit_bytes)

    # Matmul operand dtype: keep bf16 activations on the fast MXU path;
    # accumulation / SiLU math stays f32 (preferred_element_type below).
    mm_dtype = jnp.bfloat16 if out_dtype == jnp.bfloat16 else jnp.float32
    wbytes = jnp.dtype(mm_dtype).itemsize

    # --- SE weights: relu(concat_i(y @ Wi.T)) == concat_i(relu(y @ Wi.T)), so
    #     the four parallel branches collapse into one (4Cr, C) matrix.
    w_sq = jnp.concatenate(
        [params["fc1_w"], params["fc2_w"], params["fc3_w"], params["fc4_w"]],
        axis=0).astype(jnp.float32)                                    # (4Cr, C)
    w_fc = params["fc_w"].astype(jnp.float32)                          # (C, 4Cr)
    c4r = w_sq.shape[0]

    # --- fold eval-mode BatchNorm into the 1x1-conv weight / per-channel bias.
    def fold_bn(w, gamma, beta, mean, var):
        scale = (gamma / jnp.sqrt(var + bn_eps)).astype(jnp.float32)
        w_eff = (w.astype(jnp.float32) * scale[:, None]).astype(mm_dtype)
        b_eff = (beta - mean * scale).astype(jnp.float32)
        return w_eff, b_eff

    w1_eff, b1_eff = fold_bn(params["ffn1_w"], params["ffn1_bn_g"],
                             params["ffn1_bn_b"], params["ffn1_bn_m"],
                             params["ffn1_bn_v"])                      # (2C,C),(2C,)
    w2_eff, b2_eff = fold_bn(params["ffn2_w"], params["ffn2_bn_g"],
                             params["ffn2_bn_b"], params["ffn2_bn_m"],
                             params["ffn2_bn_v"])                      # (C,2C),(C,)
    b1_col = b1_eff[:, None]                                           # (2C, 1)
    b2_col = b2_eff[:, None]                                           # (C, 1)

    # No host-side pad / output slice: the reshape is free, and the kernels
    # handle any ragged HW tail themselves.
    x_flat = x_nchw.reshape(B, C, HW)

    use_fused = (not force_two_pass and
                 _fused_vmem_bytes(C, HW, elt, wbytes, c4r) <= vmem_budget)

    if use_fused:
        # ================= single fused pass: 1 read + 1 write of x ==========
        out_flat = pl.pallas_call(
            functools.partial(_fused_kernel, add=shortcut, inv_hw=1.0 / HW),
            out_shape=jax.ShapeDtypeStruct((B, C, HW), out_dtype),
            grid_spec=pltpu.PrefetchScalarGridSpec(
                num_scalar_prefetch=0,
                grid=(B,),
                in_specs=[
                    pl.BlockSpec((1, C, HW), lambda b: (b, 0, 0)),   # x slab
                    pl.BlockSpec((c4r, C),   lambda b: (0, 0)),      # SE squeeze
                    pl.BlockSpec((C, c4r),   lambda b: (0, 0)),      # SE excite
                    pl.BlockSpec((2 * C, C), lambda b: (0, 0)),      # conv1 (+BN1)
                    pl.BlockSpec((2 * C, 1), lambda b: (0, 0)),      # bias1
                    pl.BlockSpec((C, 2 * C), lambda b: (0, 0)),      # conv2 (+BN2)
                    pl.BlockSpec((C, 1),     lambda b: (0, 0)),      # bias2
                ],
                out_specs=pl.BlockSpec((1, C, HW), lambda b: (b, 0, 0)),
            ),
            compiler_params=pltpu.CompilerParams(
                dimension_semantics=("parallel",),
                vmem_limit_bytes=vmem_limit_bytes),
        )(x_flat, w_sq, w_fc, w1_eff, b1_col, w2_eff, b2_col)
        return out_flat.reshape(B, C, H, W)

    # ===================== two-pass fallback (large slabs) ====================
    thw = _pick_hw_tile(HW, C, elt, wbytes, max_tile_lanes, vmem_budget)
    n_t = (HW + thw - 1) // thw
    mask_tail = (HW % thw) != 0

    # ---- pass 1: global average pool (sums), reduction axis last.
    pooled_sum = pl.pallas_call(
        functools.partial(_pool_kernel, hw=HW, thw=thw, mask_tail=mask_tail),
        out_shape=jax.ShapeDtypeStruct((B, C, 1), jnp.float32),
        grid_spec=pltpu.PrefetchScalarGridSpec(
            num_scalar_prefetch=0,
            grid=(B, n_t),
            in_specs=[pl.BlockSpec((1, C, thw), lambda b, t: (b, 0, t))],
            out_specs=pl.BlockSpec((1, C, 1), lambda b, t: (b, 0, 0)),
            scratch_shapes=[pltpu.VMEM((1, C, thw), jnp.float32)],
        ),
        compiler_params=pltpu.CompilerParams(
            dimension_semantics=("parallel", "arbitrary"),
            vmem_limit_bytes=vmem_limit_bytes),
    )(x_flat)

    # ---- excitation (tiny matmuls) in plain JAX; precompute the effective gate.
    y = pooled_sum[:, :, 0] * (1.0 / HW)                               # (B, C)
    h = jnp.maximum(jnp.dot(y, w_sq.T, precision="highest"), 0.0)      # (B, 4Cr)
    gate = jax.nn.sigmoid(jnp.dot(h, w_fc.T, precision="highest"))     # (B, C)
    gate_eff = (1.0 + gate) if shortcut else gate
    gate_eff = gate_eff[:, :, None].astype(jnp.float32)                # (B, C, 1)

    # ---- pass 2: gate*x (+x), BN-folded 1x1-conv FFN (+res).
    out_flat = pl.pallas_call(
        functools.partial(_scale_ffn_kernel, add=shortcut),
        out_shape=jax.ShapeDtypeStruct((B, C, HW), out_dtype),
        grid_spec=pltpu.PrefetchScalarGridSpec(
            num_scalar_prefetch=0,
            grid=(B, n_t),
            in_specs=[
                pl.BlockSpec((1, C, thw), lambda b, t: (b, 0, t)),   # x tile
                pl.BlockSpec((1, C, 1),   lambda b, t: (b, 0, 0)),   # eff. SE gate
                pl.BlockSpec((2 * C, C),  lambda b, t: (0, 0)),      # conv1 (+BN1)
                pl.BlockSpec((2 * C, 1),  lambda b, t: (0, 0)),      # bias1
                pl.BlockSpec((C, 2 * C),  lambda b, t: (0, 0)),      # conv2 (+BN2)
                pl.BlockSpec((C, 1),      lambda b, t: (0, 0)),      # bias2
            ],
            out_specs=pl.BlockSpec((1, C, thw), lambda b, t: (b, 0, t)),
        ),
        compiler_params=pltpu.CompilerParams(
            dimension_semantics=("parallel", "parallel"),
            vmem_limit_bytes=vmem_limit_bytes),
    )(x_flat, gate_eff, w1_eff, b1_col, w2_eff, b2_col)

    return out_flat.reshape(B, C, H, W)


# ============================== reference ====================================


def psablock_ref(x, params, *, shortcut=True, bn_eps=1e-5):
    """Pure-JAX reference mirroring the PyTorch PSABlock (eval-mode BN)."""
    y = jnp.mean(x, axis=(2, 3))                                       # (B, C)

    def branch(w):
        return jnp.maximum(jnp.dot(y, w.T, precision="highest"), 0.0)

    yc = jnp.concatenate([branch(params["fc1_w"]), branch(params["fc2_w"]),
                          branch(params["fc3_w"]), branch(params["fc4_w"])], axis=1)
    g = jax.nn.sigmoid(jnp.dot(yc, params["fc_w"].T, precision="highest"))
    attn = x * g[:, :, None, None]
    x1 = x + attn if shortcut else attn

    def conv_bn(z, w, gamma, beta, mean, var, silu):
        zz = jnp.einsum("oc,bchw->bohw", w, z, precision="highest")
        s = gamma / jnp.sqrt(var + bn_eps)
        zz = zz * s[None, :, None, None] + (beta - mean * s)[None, :, None, None]
        return zz * jax.nn.sigmoid(zz) if silu else zz

    hidden = conv_bn(x1, params["ffn1_w"], params["ffn1_bn_g"], params["ffn1_bn_b"],
                     params["ffn1_bn_m"], params["ffn1_bn_v"], silu=True)
    ffn = conv_bn(hidden, params["ffn2_w"], params["ffn2_bn_g"], params["ffn2_bn_b"],
                  params["ffn2_bn_m"], params["ffn2_bn_v"], silu=False)
    return x1 + ffn if shortcut else ffn


if __name__ == "__main__":
    # SELayerV2 requires C >= 16 and C % 16 == 0.
    B, C, H, W = 2, 64, 16, 16
    reduction, cardinality = 16, 4
    Cr = C // reduction

    key = jax.random.PRNGKey(0)
    keys = jax.random.split(key, 17)

    def rnd(k, shape, scale=0.1):
        return jax.random.normal(k, shape, dtype=jnp.float32) * scale

    params = {
        # SELayerV2: four parallel Linear(C, Cr, bias=False) branches + fc(4Cr -> C)
        "fc1_w": rnd(keys[1], (Cr, C)),
        "fc2_w": rnd(keys[2], (Cr, C)),
        "fc3_w": rnd(keys[3], (Cr, C)),
        "fc4_w": rnd(keys[4], (Cr, C)),
        "fc_w": rnd(keys[5], (C, Cr * cardinality)),
        # ffn = Conv(C, 2C, 1) [BN + SiLU]  ->  Conv(2C, C, 1, act=False) [BN]
        "ffn1_w": rnd(keys[6], (2 * C, C)),
        "ffn1_bn_g": 1.0 + rnd(keys[7], (2 * C,), 0.05),
        "ffn1_bn_b": rnd(keys[8], (2 * C,), 0.05),
        "ffn1_bn_m": rnd(keys[9], (2 * C,), 0.05),
        "ffn1_bn_v": 1.0 + jnp.abs(rnd(keys[10], (2 * C,), 0.05)),
        "ffn2_w": rnd(keys[11], (C, 2 * C)),
        "ffn2_bn_g": 1.0 + rnd(keys[12], (C,), 0.05),
        "ffn2_bn_b": rnd(keys[13], (C,), 0.05),
        "ffn2_bn_m": rnd(keys[14], (C,), 0.05),
        "ffn2_bn_v": 1.0 + jnp.abs(rnd(keys[15], (C,), 0.05)),
    }

    # --- fused single-pass path (slab fits comfortably in VMEM) ---
    x = jax.random.normal(keys[0], (B, C, H, W), dtype=jnp.float32)
    out = jax.block_until_ready(psablock_forward(x, params))
    ref = psablock_ref(x, params)
    assert out.shape == x.shape
    err_fused = float(jnp.max(jnp.abs(out - ref)))
    assert err_fused < 2e-2, err_fused

    # --- two-pass fallback with a ragged spatial extent (HW % 128 != 0) ---
    x2 = jax.random.normal(keys[16], (B, C, 13, 13), dtype=jnp.float32)
    out2 = jax.block_until_ready(
        psablock_forward(x2, params, force_two_pass=True, max_tile_lanes=128))
    ref2 = psablock_ref(x2, params)
    assert out2.shape == x2.shape
    err_2pass = float(jnp.max(jnp.abs(out2 - ref2)))
    assert err_2pass < 2e-2, err_2pass

    print("KERNEL_OK")
</pallas_src>

<mosaic_0001>
module attributes {stable_mosaic.version = 11 : i64} {
  func.func @_fused_kernel(%arg0: i32, %arg1: memref<1x64x256xf32, #tpu.memory_space<vmem>>, %arg2: memref<16x64xf32, #tpu.memory_space<vmem>>, %arg3: memref<64x16xf32, #tpu.memory_space<vmem>>, %arg4: memref<128x64xf32, #tpu.memory_space<vmem>>, %arg5: memref<128x1xf32, #tpu.memory_space<vmem>>, %arg6: memref<64x128xf32, #tpu.memory_space<vmem>>, %arg7: memref<64x1xf32, #tpu.memory_space<vmem>>, %arg8: memref<1x64x256xf32, #tpu.memory_space<vmem>>) attributes {dimension_semantics = [#tpu.dimension_semantics<parallel>], iteration_bounds = array<i64: 2>, scalar_prefetch = 0 : i64, scratch_operands = 0 : i64, tpu.core_type = #tpu.core_type<tc>, window_params = [{transform_indices = @transform_0, window_bounds = array<i64: 1, 64, 256>}, {pipeline_mode = #tpu.pipeline_mode<synchronous>, transform_indices = @transform_1, window_bounds = array<i64: 16, 64>}, {pipeline_mode = #tpu.pipeline_mode<synchronous>, transform_indices = @transform_2, window_bounds = array<i64: 64, 16>}, {pipeline_mode = #tpu.pipeline_mode<synchronous>, transform_indices = @transform_3, window_bounds = array<i64: 128, 64>}, {pipeline_mode = #tpu.pipeline_mode<synchronous>, transform_indices = @transform_4, window_bounds = array<i64: 128, 1>}, {pipeline_mode = #tpu.pipeline_mode<synchronous>, transform_indices = @transform_5, window_bounds = array<i64: 64, 128>}, {pipeline_mode = #tpu.pipeline_mode<synchronous>, transform_indices = @transform_6, window_bounds = array<i64: 64, 1>}, {transform_indices = @transform_7, window_bounds = array<i64: 1, 64, 256>}]} {
    %c0 = arith.constant 0 : index
    %c0_0 = arith.constant 0 : index
    %c0_1 = arith.constant 0 : index
    %0 = vector.load %arg1[%c0, %c0_0, %c0_1] : memref<1x64x256xf32, #tpu.memory_space<vmem>>, vector<1x64x256xf32>
    %1 = vector.shape_cast %0 : vector<1x64x256xf32> to vector<64x256xf32>
    %cst = arith.constant dense<0.000000e+00> : vector<64xf32>
    %2 = vector.multi_reduction <add>, %1, %cst [1] : vector<64x256xf32> to vector<64xf32>
    %3 = vector.shape_cast %2 : vector<64xf32> to vector<64x1xf32>
    %cst_2 = arith.constant 3.906250e-03 : f32
    %4 = vector.broadcast %cst_2 : f32 to vector<64x1xf32>
    %5 = arith.mulf %3, %4 : vector<64x1xf32>
    %c0_3 = arith.constant 0 : index
    %c0_4 = arith.constant 0 : index
    %6 = vector.load %arg2[%c0_3, %c0_4] : memref<16x64xf32, #tpu.memory_space<vmem>>, vector<16x64xf32>
    %cst_5 = arith.constant dense<0.000000e+00> : vector<16x1xf32>
    %7 = tpu.matmul %6, %5, %cst_5 {dimension_numbers = #tpu.dot_dimension_numbers<[1], [0], [0], [1], [0, 0, 1, 1], [], []>} : vector<16x64xf32>, vector<64x1xf32>, vector<16x1xf32> -> vector<16x1xf32>
    %cst_6 = arith.constant 0.000000e+00 : f32
    %8 = vector.broadcast %cst_6 : f32 to vector<16x1xf32>
    %9 = arith.maximumf %7, %8 : vector<16x1xf32>
    %c0_7 = arith.constant 0 : index
    %c0_8 = arith.constant 0 : index
    %10 = vector.load %arg3[%c0_7, %c0_8] : memref<64x16xf32, #tpu.memory_space<vmem>>, vector<64x16xf32>
    %cst_9 = arith.constant dense<0.000000e+00> : vector<64x1xf32>
    %11 = tpu.matmul %10, %9, %cst_9 {dimension_numbers = #tpu.dot_dimension_numbers<[1], [0], [0], [1], [0, 0, 1, 1], [], []>} : vector<64x16xf32>, vector<16x1xf32>, vector<64x1xf32> -> vector<64x1xf32>
    %12 = arith.negf %11 : vector<64x1xf32>
    %13 = math.exp %12 : vector<64x1xf32>
    %cst_10 = arith.constant 1.000000e+00 : f32
    %14 = vector.broadcast %cst_10 : f32 to vector<64x1xf32>
    %15 = arith.addf %14, %13 : vector<64x1xf32>
    %16 = arith.divf %14, %15 : vector<64x1xf32>
    %cst_11 = arith.constant 1.000000e+00 : f32
    %17 = vector.broadcast %cst_11 : f32 to vector<64x1xf32>
    %18 = arith.addf %17, %16 : vector<64x1xf32>
    %19 = vector.broadcast %18 : vector<64x1xf32> to vector<64x256xf32>
    %20 = arith.mulf %1, %19 : vector<64x256xf32>
    %c0_12 = arith.constant 0 : index
    %c0_13 = arith.constant 0 : index
    %21 = vector.load %arg4[%c0_12, %c0_13] : memref<128x64xf32, #tpu.memory_space<vmem>>, vector<128x64xf32>
    %cst_14 = arith.constant dense<0.000000e+00> : vector<128x256xf32>
    %22 = tpu.matmul %21, %20, %cst_14 {dimension_numbers = #tpu.dot_dimension_numbers<[1], [0], [0], [1], [0, 0, 1, 1], [], []>} : vector<128x64xf32>, vector<64x256xf32>, vector<128x256xf32> -> vector<128x256xf32>
    %c0_15 = arith.constant 0 : index
    %c0_16 = arith.constant 0 : index
    %23 = vector.load %arg5[%c0_15, %c0_16] : memref<128x1xf32, #tpu.memory_space<vmem>>, vector<128x1xf32>
    %24 = vector.broadcast %23 : vector<128x1xf32> to vector<128x256xf32>
    %25 = arith.addf %22, %24 : vector<128x256xf32>
    %26 = arith.negf %25 : vector<128x256xf32>
    %27 = math.exp %26 : vector<128x256xf32>
    %cst_17 = arith.constant 1.000000e+00 : f32
    %28 = vector.broadcast %cst_17 : f32 to vector<128x256xf32>
    %29 = arith.addf %28, %27 : vector<128x256xf32>
    %30 = arith.divf %28, %29 : vector<128x256xf32>
    %31 = arith.mulf %25, %30 : vector<128x256xf32>
    %c0_18 = arith.constant 0 : index
    %c0_19 = arith.constant 0 : index
    %32 = vector.load %arg6[%c0_18, %c0_19] : memref<64x128xf32, #tpu.memory_space<vmem>>, vector<64x128xf32>
    %cst_20 = arith.constant dense<0.000000e+00> : vector<64x256xf32>
    %33 = tpu.matmul %32, %31, %cst_20 {dimension_numbers = #tpu.dot_dimension_numbers<[1], [0], [0], [1], [0, 0, 1, 1], [], []>} : vector<64x128xf32>, vector<128x256xf32>, vector<64x256xf32> -> vector<64x256xf32>
    %c0_21 = arith.constant 0 : index
    %c0_22 = arith.constant 0 : index
    %34 = vector.load %arg7[%c0_21, %c0_22] : memref<64x1xf32, #tpu.memory_space<vmem>>, vector<64x1xf32>
    %35 = vector.broadcast %34 : vector<64x1xf32> to vector<64x256xf32>
    %36 = arith.addf %33, %35 : vector<64x256xf32>
    %37 = arith.addf %20, %36 : vector<64x256xf32>
    %c0_23 = arith.constant 0 : index
    %c0_24 = arith.constant 0 : index
    %c0_25 = arith.constant 0 : index
    %38 = vector.load %arg8[%c0_23, %c0_24, %c0_25] : memref<1x64x256xf32, #tpu.memory_space<vmem>>, vector<1x64x256xf32>
    %39 = vector.shape_cast %38 : vector<1x64x256xf32> to vector<64x256xf32>
    %40 = vector.shape_cast %37 : vector<64x256xf32> to vector<1x64x256xf32>
    tpu.vector_store %arg8[%c0_23, %c0_24, %c0_25], %40 {strides = array<i32>} : memref<1x64x256xf32, #tpu.memory_space<vmem>>, vector<1x64x256xf32>,
    return
  }
  func.func @transform_0(%arg0: i32) -> (i32, i32, i32) {
    %c0_i32 = arith.constant 0 : i32
    %c0_i32_0 = arith.constant 0 : i32
    %c0_i32_1 = arith.constant 0 : i32
    return %arg0, %c0_i32, %c0_i32_0 : i32, i32, i32
  }
  func.func @transform_1(%arg0: i32) -> (i32, i32) {
    %c0_i32 = arith.constant 0 : i32
    %c0_i32_0 = arith.constant 0 : i32
    %c0_i32_1 = arith.constant 0 : i32
    return %c0_i32, %c0_i32_0 : i32, i32
  }
  func.func @transform_2(%arg0: i32) -> (i32, i32) {
    %c0_i32 = arith.constant 0 : i32
    %c0_i32_0 = arith.constant 0 : i32
    %c0_i32_1 = arith.constant 0 : i32
    return %c0_i32, %c0_i32_0 : i32, i32
  }
  func.func @transform_3(%arg0: i32) -> (i32, i32) {
    %c0_i32 = arith.constant 0 : i32
    %c0_i32_0 = arith.constant 0 : i32
    %c0_i32_1 = arith.constant 0 : i32
    return %c0_i32, %c0_i32_0 : i32, i32
  }
  func.func @transform_4(%arg0: i32) -> (i32, i32) {
    %c0_i32 = arith.constant 0 : i32
    %c0_i32_0 = arith.constant 0 : i32
    %c0_i32_1 = arith.constant 0 : i32
    return %c0_i32, %c0_i32_0 : i32, i32
  }
  func.func @transform_5(%arg0: i32) -> (i32, i32) {
    %c0_i32 = arith.constant 0 : i32
    %c0_i32_0 = arith.constant 0 : i32
    %c0_i32_1 = arith.constant 0 : i32
    return %c0_i32, %c0_i32_0 : i32, i32
  }
  func.func @transform_6(%arg0: i32) -> (i32, i32) {
    %c0_i32 = arith.constant 0 : i32
    %c0_i32_0 = arith.constant 0 : i32
    %c0_i32_1 = arith.constant 0 : i32
    return %c0_i32, %c0_i32_0 : i32, i32
  }
  func.func @transform_7(%arg0: i32) -> (i32, i32, i32) {
    %c0_i32 = arith.constant 0 : i32
    %c0_i32_0 = arith.constant 0 : i32
    %c0_i32_1 = arith.constant 0 : i32
    return %arg0, %c0_i32, %c0_i32_0 : i32, i32, i32
  }
}

</mosaic_0001>

<llo_original>
// kernel: tpu_custom_call.1
$region0: #{tpu_custom_call.1}
  #allocation0 [shape = 'u32[]', space=smem, size = 0x4, offset = 0x4, fixed_abs, tag = 'smem constant byte address 0x4 - core index']
  #allocation1 [shape = 'u32[72,128]{1,0:T(1,128)}', space=vmem, size = 0x9000, scoped, tag = 'internal scratch']
  %s0 = inlined_call_operand.vmem [shape: f32[2,64,256], index: 0, kind: input, shape index: {}]
  %s1 = inlined_call_operand.vmem [shape: f32[16,64], index: 1, kind: input, shape index: {}]
  %s2 = inlined_call_operand.vmem [shape: f32[64,16], index: 2, kind: input, shape index: {}]
  %s3 = inlined_call_operand.vmem [shape: f32[128,64], index: 3, kind: input, shape index: {}]
  %s4 = inlined_call_operand.vmem [shape: f32[128,1], index: 4, kind: input, shape index: {}]
  %s5 = inlined_call_operand.vmem [shape: f32[64,128], index: 5, kind: input, shape index: {}]
  %s6 = inlined_call_operand.vmem [shape: f32[64,1], index: 6, kind: input, shape index: {}]
  %s7 = inlined_call_operand.hbm [shape: f32[2,64,256], index: 7, kind: output, shape index: {}]
  %s8 = sld [smem:[#allocation0]]
  $region61: #{tpu_custom_call.1} parent=0
    _
  %s10 = ssub.s32 1, %s8
  %s11 = scalar_select 0, %s10, %s8
  $region1: #{tpu_custom_call.1} parent=0
    #allocation2 [shape = 'u8[131072]{0}', space=vmem, size = 0x20000, scoped, tag = 'output window, operand 0']
    #allocation3 [shape = 's32[2]{0}', space=sflag, size = 0x8, scoped, tag = 'scoped memory for tpu_custom_call.1']
    %12 = vsyncpa [#allocation3], 0
    %s13 = scalar_lea.sflag [#allocation3], 1
    %14 = vsyncpa %s13, 0
    loop: start=0, step=1, limit=4
    $region2: #{tpu_custom_call.1} parent=1 // loop_pre_header
      _
    $region3: #{tpu_custom_call.1} parent=1 // loop_header
      %s16 = sphi 0, %s20
      %p17 = scmp.ge.s32.totalorder %s16, 4
      %s26 = sphi 0, %s28
      %s29 = sphi 0, %s26
      %s30 = sphi 0, %s29
      %s46 = sphi 0, %s30
      %s50 = sphi 0, %s50
      %s52 = sphi 0, %s50
      %s53 = sphi 0, %s52
      %s67 = sphi 0, %s53
      %s71 = sphi 0, %s71
      %s73 = sphi 0, %s71
      %s74 = sphi 0, %s73
      %s88 = sphi 0, %s74
      %s92 = sphi 0, %s92
      %s94 = sphi 0, %s92
      %s95 = sphi 0, %s94
      %s109 = sphi 0, %s95
      %s113 = sphi 0, %s113
      %s115 = sphi 0, %s113
      %s116 = sphi 0, %s115
      %s130 = sphi 0, %s116
      %s134 = sphi 0, %s134
      %s136 = sphi 0, %s134
      %s137 = sphi 0, %s136
      %s151 = sphi 0, %s137
      %s155 = sphi 0, %s155
      %s157 = sphi 0, %s155
      %s158 = sphi 0, %s157
      %s172 = sphi 0, %s158
      %s178 = sphi 0, %s180
      %s181 = sphi 0, %s178
      %s182 = sphi 0, %s181
      %s198 = sphi 0, %s182
    $region4: #{tpu_custom_call.1} parent=1 // loop_header_branch
      %19 = sbr.rel (%p17) target = $region8
    $region5: #{tpu_custom_call.1} parent=1 // loop_body
      %s21 = ssub.s32 %s16, 1
      %s22 = ssub.s32 %s16, 2
      %s23 = sadd.s32 %s16, 1
      %s24 = ssub.s32 %s16, %s23
      %p25 = scmp.eq.s32.totalorder %s24, 0
      %s27 = sadd.s32 %s26, 1
      %s28 = scalar_select %p25, %s26, %s27
      %p31 = pneg %p25
      %p32 = scmp.eq.s32.totalorder %s16, 1
      %p33 = por %p31, %p32
      %p34 = scmp.ne.s32.totalorder %s26, %s29
      %p35 = scmp.eq.s32.totalorder %s16, 0
      %p36 = por %p34, %p35
      %p37 = scmp.ne.s32.totalorder %s26, %s29
      %p38 = scmp.eq.s32.totalorder %s21, 1
      %p39 = por %p37, %p38
      %p40 = scmp.ne.s32.totalorder %s29, %s30
      %p41 = scmp.eq.s32.totalorder %s21, 0
      %p42 = por %p40, %p41
      %p43 = scmp.ne.s32.totalorder %s29, %s30
      %p44 = scmp.eq.s32.totalorder %s22, 1
      %p45 = por %p43, %p44
      %p47 = scmp.ne.s32.totalorder %s30, %s46
      %p48 = scmp.eq.s32.totalorder %s22, 0
      %p49 = por %p47, %p48
      %s51 = sadd.s32 %s50, 1
      %p54 = scmp.eq.s32.totalorder %s16, 1
      %p55 = scmp.ne.s32.totalorder %s50, %s52
      %p56 = scmp.eq.s32.totalorder %s16, 0
      %p57 = por %p55, %p56
      %p58 = scmp.ne.s32.totalorder %s50, %s52
      %p59 = scmp.eq.s32.totalorder %s21, 1
      %p60 = por %p58, %p59
      %p61 = scmp.ne.s32.totalorder %s52, %s53
      %p62 = scmp.eq.s32.totalorder %s21, 0
      %p63 = por %p61, %p62
      %p64 = scmp.ne.s32.totalorder %s52, %s53
      %p65 = scmp.eq.s32.totalorder %s22, 1
      %p66 = por %p64, %p65
      %p68 = scmp.ne.s32.totalorder %s53, %s67
      %p69 = scmp.eq.s32.totalorder %s22, 0
      %p70 = por %p68, %p69
      %s72 = sadd.s32 %s71, 1
      %p75 = scmp.eq.s32.totalorder %s16, 1
      %p76 = scmp.ne.s32.totalorder %s71, %s73
      %p77 = scmp.eq.s32.totalorder %s16, 0
      %p78 = por %p76, %p77
      %p79 = scmp.ne.s32.totalorder %s71, %s73
      %p80 = scmp.eq.s32.totalorder %s21, 1
      %p81 = por %p79, %p80
      %p82 = scmp.ne.s32.totalorder %s73, %s74
      %p83 = scmp.eq.s32.totalorder %s21, 0
      %p84 = por %p82, %p83
      %p85 = scmp.ne.s32.totalorder %s73, %s74
      %p86 = scmp.eq.s32.totalorder %s22, 1
      %p87 = por %p85, %p86
      %p89 = scmp.ne.s32.totalorder %s74, %s88
      %p90 = scmp.eq.s32.totalorder %s22, 0
      %p91 = por %p89, %p90
      %s93 = sadd.s32 %s92, 1
      %p96 = scmp.eq.s32.totalorder %s16, 1
      %p97 = scmp.ne.s32.totalorder %s92, %s94
      %p98 = scmp.eq.s32.totalorder %s16, 0
      %p99 = por %p97, %p98
      %p100 = scmp.ne.s32.totalorder %s92, %s94
      %p101 = scmp.eq.s32.totalorder %s21, 1
      %p102 = por %p100, %p101
      %p103 = scmp.ne.s32.totalorder %s94, %s95
      %p104 = scmp.eq.s32.totalorder %s21, 0
      %p105 = por %p103, %p104
      %p106 = scmp.ne.s32.totalorder %s94, %s95
      %p107 = scmp.eq.s32.totalorder %s22, 1
      %p108 = por %p106, %p107
      %p110 = scmp.ne.s32.totalorder %s95, %s109
      %p111 = scmp.eq.s32.totalorder %s22, 0
      %p112 = por %p110, %p111
      %s114 = sadd.s32 %s113, 1
      %p117 = scmp.eq.s32.totalorder %s16, 1
      %p118 = scmp.ne.s32.totalorder %s113, %s115
      %p119 = scmp.eq.s32.totalorder %s16, 0
      %p120 = por %p118, %p119
      %p121 = scmp.ne.s32.totalorder %s113, %s115
      %p122 = scmp.eq.s32.totalorder %s21, 1
      %p123 = por %p121, %p122
      %p124 = scmp.ne.s32.totalorder %s115, %s116
      %p125 = scmp.eq.s32.totalorder %s21, 0
      %p126 = por %p124, %p125
      %p127 = scmp.ne.s32.totalorder %s115, %s116
      %p128 = scmp.eq.s32.totalorder %s22, 1
      %p129 = por %p127, %p128
      %p131 = scmp.ne.s32.totalorder %s116, %s130
      %p132 = scmp.eq.s32.totalorder %s22, 0
      %p133 = por %p131, %p132
      %s135 = sadd.s32 %s134, 1
      %p138 = scmp.eq.s32.totalorder %s16, 1
      %p139 = scmp.ne.s32.totalorder %s134, %s136
      %p140 = scmp.eq.s32.totalorder %s16, 0
      %p141 = por %p139, %p140
      %p142 = scmp.ne.s32.totalorder %s134, %s136
      %p143 = scmp.eq.s32.totalorder %s21, 1
      %p144 = por %p142, %p143
      %p145 = scmp.ne.s32.totalorder %s136, %s137
      %p146 = scmp.eq.s32.totalorder %s21, 0
      %p147 = por %p145, %p146
      %p148 = scmp.ne.s32.totalorder %s136, %s137
      %p149 = scmp.eq.s32.totalorder %s22, 1
      %p150 = por %p148, %p149
      %p152 = scmp.ne.s32.totalorder %s137, %s151
      %p153 = scmp.eq.s32.totalorder %s22, 0
      %p154 = por %p152, %p153
      %s156 = sadd.s32 %s155, 1
      %p159 = scmp.eq.s32.totalorder %s16, 1
      %p160 = scmp.ne.s32.totalorder %s155, %s157
      %p161 = scmp.eq.s32.totalorder %s16, 0
      %p162 = por %p160, %p161
      %p163 = scmp.ne.s32.totalorder %s155, %s157
      %p164 = scmp.eq.s32.totalorder %s21, 1
      %p165 = por %p163, %p164
      %p166 = scmp.ne.s32.totalorder %s157, %s158
      %p167 = scmp.eq.s32.totalorder %s21, 0
      %p168 = por %p166, %p167
      %p169 = scmp.ne.s32.totalorder %s157, %s158
      %p170 = scmp.eq.s32.totalorder %s22, 1
      %p171 = por %p169, %p170
      %p173 = scmp.ne.s32.totalorder %s158, %s172
      %p174 = scmp.eq.s32.totalorder %s22, 0
      %p175 = por %p173, %p174
      %s176 = ssub.s32 %s16, %s23
      %p177 = scmp.eq.s32.totalorder %s176, 0
      %s179 = sadd.s32 %s178, 1
      %s180 = scalar_select %p177, %s178, %s179
      %p183 = pneg %p177
      %p184 = scmp.eq.s32.totalorder %s16, 1
      %p185 = por %p183, %p184
      %p186 = scmp.ne.s32.totalorder %s178, %s181
      %p187 = scmp.eq.s32.totalorder %s16, 0
      %p188 = por %p186, %p187
      %p189 = scmp.ne.s32.totalorder %s178, %s181
      %p190 = scmp.eq.s32.totalorder %s21, 1
      %p191 = por %p189, %p190
      %p192 = scmp.ne.s32.totalorder %s181, %s182
      %p193 = scmp.eq.s32.totalorder %s21, 0
      %p194 = por %p192, %p193
      %p195 = scmp.ne.s32.totalorder %s181, %s182
      %p196 = scmp.eq.s32.totalorder %s22, 1
      %p197 = por %p195, %p196
      %p199 = scmp.ne.s32.totalorder %s182, %s198
      %p200 = scmp.eq.s32.totalorder %s22, 0
      %p201 = por %p199, %p200
      %p202 = scmp.le.s32.totalorder 1, %s16
      %p203 = scmp.lt.s32.totalorder %s16, 3
      %p204 = pnand %p202, %p203
      %p205 = pneg %p204
      // Predicated region
      $region9: #{tpu_custom_call.1} parent=5 // pred_check
        _
      $region10: #{tpu_custom_call.1} parent=5 // pred_check_branch
        %207 = sbr.rel (%p204) target = $region12
      $region11: #{tpu_custom_call.1} parent=5 // pred_region
        %s208 = ssub.s32 %s16, 1
        // Predicated region
        $region13: #{tpu_custom_call.1} parent=11 // pred_check
          %p209 = pneg %p63
        $region14: #{tpu_custom_call.1} parent=11 // pred_check_branch
          %211 = sbr.rel (%p209) target = $region16
        $region15: #{tpu_custom_call.1} parent=11 // pred_region
          _
        $region16: #{tpu_custom_call.1} parent=11 // pred_fallthru
          _
        // Predicated region
        $region17: #{tpu_custom_call.1} parent=11 // pred_check
          %p212 = pneg %p84
        $region18: #{tpu_custom_call.1} parent=11 // pred_check_branch
          %214 = sbr.rel (%p212) target = $region20
        $region19: #{tpu_custom_call.1} parent=11 // pred_region
          _
        $region20: #{tpu_custom_call.1} parent=11 // pred_fallthru
          _
        // Predicated region
        $region21: #{tpu_custom_call.1} parent=11 // pred_check
          %p215 = pneg %p105
        $region22: #{tpu_custom_call.1} parent=11 // pred_check_branch
          %217 = sbr.rel (%p215) target = $region24
        $region23: #{tpu_custom_call.1} parent=11 // pred_region
          _
        $region24: #{tpu_custom_call.1} parent=11 // pred_fallthru
          _
        // Predicated region
        $region25: #{tpu_custom_call.1} parent=11 // pred_check
          %p218 = pneg %p126
        $region26: #{tpu_custom_call.1} parent=11 // pred_check_branch
          %220 = sbr.rel (%p218) target = $region28
        $region27: #{tpu_custom_call.1} parent=11 // pred_region
          _
        $region28: #{tpu_custom_call.1} parent=11 // pred_fallthru
          _
        // Predicated region
        $region29: #{tpu_custom_call.1} parent=11 // pred_check
          %p221 = pneg %p147
        $region30: #{tpu_custom_call.1} parent=11 // pred_check_branch
          %223 = sbr.rel (%p221) target = $region32
        $region31: #{tpu_custom_call.1} parent=11 // pred_region
          _
        $region32: #{tpu_custom_call.1} parent=11 // pred_fallthru
          _
        // Predicated region
        $region33: #{tpu_custom_call.1} parent=11 // pred_check
          %p224 = pneg %p168
        $region34: #{tpu_custom_call.1} parent=11 // pred_check_branch
          %226 = sbr.rel (%p224) target = $region36
        $region35: #{tpu_custom_call.1} parent=11 // pred_region
          _
        $region36: #{tpu_custom_call.1} parent=11 // pred_fallthru
          _
      $region12: #{tpu_custom_call.1} parent=5 // pred_fallthru
        _
      %p227 = scmp.lt.s32.totalorder %s16, 2
      // Predicated region
      $region37: #{tpu_custom_call.1} parent=5 // pred_check
        %p228 = pneg %p227
      $region38: #{tpu_custom_call.1} parent=5 // pred_check_branch
        %230 = sbr.rel (%p228) target = $region40
      $region39: #{tpu_custom_call.1} parent=5 // pred_region
        // Predicated region
        $region41: #{tpu_custom_call.1} parent=39 // pred_check
          %p231 = pneg %p36
        $region42: #{tpu_custom_call.1} parent=39 // pred_check_branch
          %233 = sbr.rel (%p231) target = $region44
        $region43: #{tpu_custom_call.1} parent=39 // pred_region
          %p234 = scmp.lt.s32.totalorder %s16, 1
          %s235 = scalar_select %p234, %s16, 1
          %s236 = smul.addr %s235, 16
          %s237 = smul.addr %s236, 8
          %s238 = scalar_lea.vmem %s0, %s237
        $region44: #{tpu_custom_call.1} parent=39 // pred_fallthru
          _
      $region40: #{tpu_custom_call.1} parent=5 // pred_fallthru
        _
      %p239 = scmp.le.s32.totalorder 1, %s16
      %p240 = scmp.lt.s32.totalorder %s16, 3
      %p241 = pnand %p239, %p240
      %p242 = pneg %p241
      // Predicated region
      $region45: #{tpu_custom_call.1} parent=5 // pred_check
        _
      $region46: #{tpu_custom_call.1} parent=5 // pred_check_branch
        %244 = sbr.rel (%p241) target = $region48
      $region47: #{tpu_custom_call.1} parent=5 // pred_region
        %s245 = ssub.s32 %s16, 1
        %p246 = scmp.lt.s32.totalorder %s21, 1
        %s247 = scalar_select %p246, %s21, 1
        %s248 = smul.addr %s247, 16
        %s249 = smul.addr %s248, 8
        %s250 = scalar_lea.vmem %s0, %s249
        %p251 = pneg %p42
        %p252 = pneg %p39
        %p253 = pneg %p63
        %p254 = pneg %p60
        %p255 = pneg %p84
        %p256 = pneg %p81
        %p257 = pneg %p105
        %p258 = pneg %p102
        %p259 = pneg %p126
        %p260 = pneg %p123
        %p261 = pneg %p147
        %p262 = pneg %p144
        %p263 = pneg %p168
        %p264 = pneg %p165
        %p265 = pneg %p194
        %p266 = pneg %p191
        %s267 = sand.u32 %s181, 1
        %s268 = scalar_lea.sflag [#allocation3], %s267
        %s269 = sand.u32 %s181, 1
        %s270 = smul.addr %s269, 128
        %s271 = scalar_lea.vmem [#allocation2], %s270
        %p272 = scmp.lt.s32.totalorder %s21, 1
        %s273 = scalar_select %p272, %s21, 1
        %s274 = smul.addr %s273, 16
        %s275 = smul.addr %s274, 8
        %s276 = scalar_lea.vmem %s0, %s275
        %v277 = vld [vmem:[%s276] sm:$0xff]
        %v278 = vld [vmem:[%s276 + $0x8] sm:$0xff]
        %v279 = vld [vmem:[%s276 + $0x10] sm:$0xff]
        %v280 = vld [vmem:[%s276 + $0x18] sm:$0xff]
        %v281 = vld [vmem:[%s276 + $0x20] sm:$0xff]
        %v282 = vld [vmem:[%s276 + $0x28] sm:$0xff]
        %v283 = vld [vmem:[%s276 + $0x30] sm:$0xff]
        %v284 = vld [vmem:[%s276 + $0x38] sm:$0xff]
        %v285 = vld [vmem:[%s276 + $0x40] sm:$0xff]
        %v286 = vld [vmem:[%s276 + $0x48] sm:$0xff]
        %v287 = vld [vmem:[%s276 + $0x50] sm:$0xff]
        %v288 = vld [vmem:[%s276 + $0x58] sm:$0xff]
        %v289 = vld [vmem:[%s276 + $0x60] sm:$0xff]
        %v290 = vld [vmem:[%s276 + $0x68] sm:$0xff]
        %v291 = vld [vmem:[%s276 + $0x70] sm:$0xff]
        %v292 = vld [vmem:[%s276 + $0x78] sm:$0xff]
        %v293 = vadd.f32 %v277, %v278
        %294 = vadd.xlane.f32.xlu0 %v293
        %v295 = vpop.xlane.xlu0 %294
        %v296 = vadd.f32 %v279, %v280
        %297 = vadd.xlane.f32.xlu0 %v296
        %v298 = vpop.xlane.xlu0 %297
        %v299 = vadd.f32 %v281, %v282
        %300 = vadd.xlane.f32.xlu0 %v299
        %v301 = vpop.xlane.xlu0 %300
        %v302 = vadd.f32 %v283, %v284
        %303 = vadd.xlane.f32.xlu0 %v302
        %v304 = vpop.xlane.xlu0 %303
        %v305 = vadd.f32 %v285, %v286
        %306 = vadd.xlane.f32.xlu0 %v305
        %v307 = vpop.xlane.xlu0 %306
        %v308 = vadd.f32 %v287, %v288
        %309 = vadd.xlane.f32.xlu0 %v308
        %v310 = vpop.xlane.xlu0 %309
        %v311 = vadd.f32 %v289, %v290
        %312 = vadd.xlane.f32.xlu0 %v311
        %v313 = vpop.xlane.xlu0 %312
        %v314 = vadd.f32 %v291, %v292
        %315 = vadd.xlane.f32.xlu0 %v314
        %v316 = vpop.xlane.xlu0 %315
        %v317 = vmul.f32 %v295, 0.00390625
        %v318 = vmul.f32 %v298, 0.00390625
        %v319 = vmul.f32 %v301, 0.00390625
        %v320 = vmul.f32 %v304, 0.00390625
        %v321 = vmul.f32 %v307, 0.00390625
        %v322 = vmul.f32 %v310, 0.00390625
        %v323 = vmul.f32 %v313, 0.00390625
        %v324 = vmul.f32 %v316, 0.00390625
        %v325 = vld [vmem:[%s1] sm:$0xff]
        %v326 = vld [vmem:[%s1 + $0x8] sm:$0xff]
        %vm327 = vcmask 523264
        %v329 = vsel %vm327, %v325, 0
        %v332 = vsel %vm327, %v326, 0
        %334 = vmatpush.msra.mxu0 0.0
        %335 = vmatpush.msra.mxu0 0.0
        %336 = vmatpush.msra.mxu0 0.0
        %337 = vmatpush.msra.mxu0 0.0
        %338 = vmatpush.msra.mxu0 0.0
        %339 = vmatpush.msra.mxu0 0.0
        %340 = vmatpush.msra.mxu0 0.0
        %341 = vmatpush.msra.mxu0 0.0
        %342 = vmatpush.msra.mxu0 %v324
        %343 = vmatpush.msra.mxu0 %v323
        %344 = vmatpush.msra.mxu0 %v322
        %345 = vmatpush.msra.mxu0 %v321
        %346 = vmatpush.msra.mxu0 %v320
        %347 = vmatpush.msra.mxu0 %v319
        %348 = vmatpush.msra.mxu0 %v318
        %349 = vmatpush.msra.mxu0 %v317
        %350 = vmatmul.f32.gmra.mxu0 %v329
        %v351 = vpop.f32.mrf.mxu0
        %v352 = vadd.f32 0.0, %v351
        %353 = vmatmul.f32.gmra.mxu0 %v332
        %v354 = vpop.f32.mrf.mxu0
        %v355 = vadd.f32 0.0, %v354
        %356 = vdwg.mxu0
        %v357 = vmax.f32 %v352, 0.0
        %v358 = vmax.f32 %v355, 0.0
        %v359 = vld [vmem:[%s2] sm:$0xff]
        %v360 = vld [vmem:[%s2 + $0x8] sm:$0xff]
        %v361 = vld [vmem:[%s2 + $0x10] sm:$0xff]
        %v362 = vld [vmem:[%s2 + $0x18] sm:$0xff]
        %v363 = vld [vmem:[%s2 + $0x20] sm:$0xff]
        %v364 = vld [vmem:[%s2 + $0x28] sm:$0xff]
        %v365 = vld [vmem:[%s2 + $0x30] sm:$0xff]
        %v366 = vld [vmem:[%s2 + $0x38] sm:$0xff]
        %vm367 = vcmask 130048
        %v369 = vsel %vm367, %v359, 0
        %v372 = vsel %vm367, %v360, 0
        %v375 = vsel %vm367, %v361, 0
        %v378 = vsel %vm367, %v362, 0
        %v381 = vsel %vm367, %v363, 0
        %v384 = vsel %vm367, %v364, 0
        %v387 = vsel %vm367, %v365, 0
        %v390 = vsel %vm367, %v366, 0
        %392 = vmatpush.msra.mxu0 0.0
        %393 = vmatpush.msra.mxu0 0.0
        %394 = vmatpush.msra.mxu0 0.0
        %395 = vmatpush.msra.mxu0 0.0
        %396 = vmatpush.msra.mxu0 0.0
        %397 = vmatpush.msra.mxu0 0.0
        %398 = vmatpush.msra.mxu0 0.0
        %399 = vmatpush.msra.mxu0 0.0
        %400 = vmatpush.msra.mxu0 0.0
        %401 = vmatpush.msra.mxu0 0.0
        %402 = vmatpush.msra.mxu0 0.0
        %403 = vmatpush.msra.mxu0 0.0
        %404 = vmatpush.msra.mxu0 0.0
        %405 = vmatpush.msra.mxu0 0.0
        %406 = vmatpush.msra.mxu0 %v358
        %407 = vmatpush.msra.mxu0 %v357
        %408 = vmatmul.f32.gmra.mxu0 %v369
        %v409 = vpop.f32.mrf.mxu0
        %v410 = vadd.f32 0.0, %v409
        %411 = vmatmul.f32.gmra.mxu0 %v372
        %v412 = vpop.f32.mrf.mxu0
        %v413 = vadd.f32 0.0, %v412
        %414 = vmatmul.f32.gmra.mxu0 %v375
        %v415 = vpop.f32.mrf.mxu0
        %v416 = vadd.f32 0.0, %v415
        %417 = vmatmul.f32.gmra.mxu0 %v378
        %v418 = vpop.f32.mrf.mxu0
        %v419 = vadd.f32 0.0, %v418
        %420 = vmatmul.f32.gmra.mxu0 %v381
        %v421 = vpop.f32.mrf.mxu0
        %v422 = vadd.f32 0.0, %v421
        %423 = vmatmul.f32.gmra.mxu0 %v384
        %v424 = vpop.f32.mrf.mxu0
        %v425 = vadd.f32 0.0, %v424
        %426 = vmatmul.f32.gmra.mxu0 %v387
        %v427 = vpop.f32.mrf.mxu0
        %v428 = vadd.f32 0.0, %v427
        %429 = vmatmul.f32.gmra.mxu0 %v390
        %v430 = vpop.f32.mrf.mxu0
        %v431 = vadd.f32 0.0, %v430
        %432 = vdwg.mxu0
        %v433 = vxor.u32 %v410, 2147483648
        %v434 = vxor.u32 %v413, 2147483648
        %v435 = vxor.u32 %v416, 2147483648
        %v436 = vxor.u32 %v419, 2147483648
        %v437 = vxor.u32 %v422, 2147483648
        %v438 = vxor.u32 %v425, 2147483648
        %v439 = vxor.u32 %v428, 2147483648
        %v440 = vxor.u32 %v431, 2147483648
        %v441 = vmul.f32 %v433, 1.442695
        %v442 = vpow.pop %v441
        %v443 = vmul.f32 %v434, 1.442695
        %v444 = vpow.pop %v443
        %v445 = vmul.f32 %v435, 1.442695
        %v446 = vpow.pop %v445
        %v447 = vmul.f32 %v436, 1.442695
        %v448 = vpow.pop %v447
        %v449 = vmul.f32 %v437, 1.442695
        %v450 = vpow.pop %v449
        %v451 = vmul.f32 %v438, 1.442695
        %v452 = vpow.pop %v451
        %v453 = vmul.f32 %v439, 1.442695
        %v454 = vpow.pop %v453
        %v455 = vmul.f32 %v440, 1.442695
        %v456 = vpow.pop %v455
        %v457 = vadd.f32 %v442, 1.0
        %v458 = vadd.f32 %v444, 1.0
        %v459 = vadd.f32 %v446, 1.0
        %v460 = vadd.f32 %v448, 1.0
        %v461 = vadd.f32 %v450, 1.0
        %v462 = vadd.f32 %v452, 1.0
        %v463 = vadd.f32 %v454, 1.0
        %v464 = vadd.f32 %v456, 1.0
        %v465 = vrcp.pop %v457
        %v466 = vmul.f32 %v457, %v465
        %v467 = vsub.f32 1.0, %v466
        %v468 = vmul.f32 %v465, %v467
        %v469 = vadd.f32 %v465, %v468
        %vm470 = vweird.f32 %v457
        %vm471 = vweird.f32 %v465
        %vm472 = vmor %vm470, %vm471
        %v473 = vsel %vm472, %v465, %v469
        %v474 = vand.u32 2147483647, %v457
        %vm475 = vcmp.eq.f32.partialorder %v474, 8.507059e+37
        %v476 = vand.u32 %v457, 2147483648
        %v477 = vor.u32 1.1754944e-38, %v476
        %v478 = vsel %vm475, %v477, %v473
        %v479 = vmul.f32 1.0, %v478
        %v480 = vrcp.pop %v458
        %v481 = vmul.f32 %v458, %v480
        %v482 = vsub.f32 1.0, %v481
        %v483 = vmul.f32 %v480, %v482
        %v484 = vadd.f32 %v480, %v483
        %vm485 = vweird.f32 %v458
        %vm486 = vweird.f32 %v480
        %vm487 = vmor %vm485, %vm486
        %v488 = vsel %vm487, %v480, %v484
        %v489 = vand.u32 2147483647, %v458
        %vm490 = vcmp.eq.f32.partialorder %v489, 8.507059e+37
        %v491 = vand.u32 %v458, 2147483648
        %v492 = vor.u32 1.1754944e-38, %v491
        %v493 = vsel %vm490, %v492, %v488
        %v494 = vmul.f32 1.0, %v493
        %v495 = vrcp.pop %v459
        %v496 = vmul.f32 %v459, %v495
        %v497 = vsub.f32 1.0, %v496
        %v498 = vmul.f32 %v495, %v497
        %v499 = vadd.f32 %v495, %v498
        %vm500 = vweird.f32 %v459
        %vm501 = vweird.f32 %v495
        %vm502 = vmor %vm500, %vm501
        %v503 = vsel %vm502, %v495, %v499
        %v504 = vand.u32 2147483647, %v459
        %vm505 = vcmp.eq.f32.partialorder %v504, 8.507059e+37
        %v506 = vand.u32 %v459, 2147483648
        %v507 = vor.u32 1.1754944e-38, %v506
        %v508 = vsel %vm505, %v507, %v503
        %v509 = vmul.f32 1.0, %v508
        %v510 = vrcp.pop %v460
        %v511 = vmul.f32 %v460, %v510
        %v512 = vsub.f32 1.0, %v511
        %v513 = vmul.f32 %v510, %v512
        %v514 = vadd.f32 %v510, %v513
        %vm515 = vweird.f32 %v460
        %vm516 = vweird.f32 %v510
        %vm517 = vmor %vm515, %vm516
        %v518 = vsel %vm517, %v510, %v514
        %v519 = vand.u32 2147483647, %v460
        %vm520 = vcmp.eq.f32.partialorder %v519, 8.507059e+37
        %v521 = vand.u32 %v460, 2147483648
        %v522 = vor.u32 1.1754944e-38, %v521
        %v523 = vsel %vm520, %v522, %v518
        %v524 = vmul.f32 1.0, %v523
        %v525 = vrcp.pop %v461
        %v526 = vmul.f32 %v461, %v525
        %v527 = vsub.f32 1.0, %v526
        %v528 = vmul.f32 %v525, %v527
        %v529 = vadd.f32 %v525, %v528
        %vm530 = vweird.f32 %v461
        %vm531 = vweird.f32 %v525
        %vm532 = vmor %vm530, %vm531
        %v533 = vsel %vm532, %v525, %v529
        %v534 = vand.u32 2147483647, %v461
        %vm535 = vcmp.eq.f32.partialorder %v534, 8.507059e+37
        %v536 = vand.u32 %v461, 2147483648
        %v537 = vor.u32 1.1754944e-38, %v536
        %v538 = vsel %vm535, %v537, %v533
        %v539 = vmul.f32 1.0, %v538
        %v540 = vrcp.pop %v462
        %v541 = vmul.f32 %v462, %v540
        %v542 = vsub.f32 1.0, %v541
        %v543 = vmul.f32 %v540, %v542
        %v544 = vadd.f32 %v540, %v543
        %vm545 = vweird.f32 %v462
        %vm546 = vweird.f32 %v540
        %vm547 = vmor %vm545, %vm546
        %v548 = vsel %vm547, %v540, %v544
        %v549 = vand.u32 2147483647, %v462
        %vm550 = vcmp.eq.f32.partialorder %v549, 8.507059e+37
        %v551 = vand.u32 %v462, 2147483648
        %v552 = vor.u32 1.1754944e-38, %v551
        %v553 = vsel %vm550, %v552, %v548
        %v554 = vmul.f32 1.0, %v553
        %v555 = vrcp.pop %v463
        %v556 = vmul.f32 %v463, %v555
        %v557 = vsub.f32 1.0, %v556
        %v558 = vmul.f32 %v555, %v557
        %v559 = vadd.f32 %v555, %v558
        %vm560 = vweird.f32 %v463
        %vm561 = vweird.f32 %v555
        %vm562 = vmor %vm560, %vm561
        %v563 = vsel %vm562, %v555, %v559
        %v564 = vand.u32 2147483647, %v463
        %vm565 = vcmp.eq.f32.partialorder %v564, 8.507059e+37
        %v566 = vand.u32 %v463, 2147483648
        %v567 = vor.u32 1.1754944e-38, %v566
        %v568 = vsel %vm565, %v567, %v563
        %v569 = vmul.f32 1.0, %v568
        %v570 = vrcp.pop %v464
        %v571 = vmul.f32 %v464, %v570
        %v572 = vsub.f32 1.0, %v571
        %v573 = vmul.f32 %v570, %v572
        %v574 = vadd.f32 %v570, %v573
        %vm575 = vweird.f32 %v464
        %vm576 = vweird.f32 %v570
        %vm577 = vmor %vm575, %vm576
        %v578 = vsel %vm577, %v570, %v574
        %v579 = vand.u32 2147483647, %v464
        %vm580 = vcmp.eq.f32.partialorder %v579, 8.507059e+37
        %v581 = vand.u32 %v464, 2147483648
        %v582 = vor.u32 1.1754944e-38, %v581
        %v583 = vsel %vm580, %v582, %v578
        %v584 = vmul.f32 1.0, %v583
        %v585 = vadd.f32 %v479, 1.0
        %v586 = vadd.f32 %v494, 1.0
        %v587 = vadd.f32 %v509, 1.0
        %v588 = vadd.f32 %v524, 1.0
        %v589 = vadd.f32 %v539, 1.0
        %v590 = vadd.f32 %v554, 1.0
        %v591 = vadd.f32 %v569, 1.0
        %v592 = vadd.f32 %v584, 1.0
        %594 = vset.pattern.permute.xlu0 0
        %595 = vperm.xlu0 %594, %v585
        %v596 = vpop.permute.xlu0 %595
        %599 = vset.pattern.permute.xlu0 0
        %600 = vperm.xlu0 %599, %v586
        %v601 = vpop.permute.xlu0 %600
        %604 = vset.pattern.permute.xlu0 0
        %605 = vperm.xlu0 %604, %v587
        %v606 = vpop.permute.xlu0 %605
        %609 = vset.pattern.permute.xlu0 0
        %610 = vperm.xlu0 %609, %v588
        %v611 = vpop.permute.xlu0 %610
        %614 = vset.pattern.permute.xlu0 0
        %615 = vperm.xlu0 %614, %v589
        %v616 = vpop.permute.xlu0 %615
        %619 = vset.pattern.permute.xlu0 0
        %620 = vperm.xlu0 %619, %v590
        %v621 = vpop.permute.xlu0 %620
        %624 = vset.pattern.permute.xlu0 0
        %625 = vperm.xlu0 %624, %v591
        %v626 = vpop.permute.xlu0 %625
        %629 = vset.pattern.permute.xlu0 0
        %630 = vperm.xlu0 %629, %v592
        %v631 = vpop.permute.xlu0 %630
        %v633 = vmul.f32 %v277, %v596
        %v634 = vmul.f32 %v278, %v596
        %v635 = vmul.f32 %v279, %v601
        %v636 = vmul.f32 %v280, %v601
        %v637 = vmul.f32 %v281, %v606
        %v638 = vmul.f32 %v282, %v606
        %v639 = vmul.f32 %v283, %v611
        %v640 = vmul.f32 %v284, %v611
        %v641 = vmul.f32 %v285, %v616
        %v642 = vmul.f32 %v286, %v616
        %v643 = vmul.f32 %v287, %v621
        %v644 = vmul.f32 %v288, %v621
        %v645 = vmul.f32 %v289, %v626
        %v646 = vmul.f32 %v290, %v626
        %v647 = vmul.f32 %v291, %v631
        %v648 = vmul.f32 %v292, %v631
        %v649 = vld [vmem:[%s3] sm:$0xff]
        %v650 = vld [vmem:[%s3 + $0x8] sm:$0xff]
        %v651 = vld [vmem:[%s3 + $0x10] sm:$0xff]
        %v652 = vld [vmem:[%s3 + $0x18] sm:$0xff]
        %v653 = vld [vmem:[%s3 + $0x20] sm:$0xff]
        %v654 = vld [vmem:[%s3 + $0x28] sm:$0xff]
        %v655 = vld [vmem:[%s3 + $0x30] sm:$0xff]
        %v656 = vld [vmem:[%s3 + $0x38] sm:$0xff]
        %v657 = vld [vmem:[%s3 + $0x40] sm:$0xff]
        %v658 = vld [vmem:[%s3 + $0x48] sm:$0xff]
        %v659 = vld [vmem:[%s3 + $0x50] sm:$0xff]
        %v660 = vld [vmem:[%s3 + $0x58] sm:$0xff]
        %v661 = vld [vmem:[%s3 + $0x60] sm:$0xff]
        %v662 = vld [vmem:[%s3 + $0x68] sm:$0xff]
        %v663 = vld [vmem:[%s3 + $0x70] sm:$0xff]
        %v664 = vld [vmem:[%s3 + $0x78] sm:$0xff]
        %v665 = vld [vmem:[%s4] sm:$0xff]
        %v666 = vld [vmem:[%s4 + $0x8] sm:$0xff]
        %v667 = vld [vmem:[%s4 + $0x10] sm:$0xff]
        %v668 = vld [vmem:[%s4 + $0x18] sm:$0xff]
        %v669 = vld [vmem:[%s4 + $0x20] sm:$0xff]
        %v670 = vld [vmem:[%s4 + $0x28] sm:$0xff]
        %v671 = vld [vmem:[%s4 + $0x30] sm:$0xff]
        %v672 = vld [vmem:[%s4 + $0x38] sm:$0xff]
        %v673 = vld [vmem:[%s4 + $0x40] sm:$0xff]
        %v674 = vld [vmem:[%s4 + $0x48] sm:$0xff]
        %v675 = vld [vmem:[%s4 + $0x50] sm:$0xff]
        %v676 = vld [vmem:[%s4 + $0x58] sm:$0xff]
        %v677 = vld [vmem:[%s4 + $0x60] sm:$0xff]
        %v678 = vld [vmem:[%s4 + $0x68] sm:$0xff]
        %v679 = vld [vmem:[%s4 + $0x70] sm:$0xff]
        %v680 = vld [vmem:[%s4 + $0x78] sm:$0xff]
        %682 = vset.pattern.permute.xlu0 0
        %683 = vperm.xlu0 %682, %v665
        %v684 = vpop.permute.xlu0 %683
        %687 = vset.pattern.permute.xlu0 0
        %688 = vperm.xlu0 %687, %v666
        %v689 = vpop.permute.xlu0 %688
        %692 = vset.pattern.permute.xlu0 0
        %693 = vperm.xlu0 %692, %v667
        %v694 = vpop.permute.xlu0 %693
        %697 = vset.pattern.permute.xlu0 0
        %698 = vperm.xlu0 %697, %v668
        %v699 = vpop.permute.xlu0 %698
        %702 = vset.pattern.permute.xlu0 0
        %703 = vperm.xlu0 %702, %v669
        %v704 = vpop.permute.xlu0 %703
        %707 = vset.pattern.permute.xlu0 0
        %708 = vperm.xlu0 %707, %v670
        %v709 = vpop.permute.xlu0 %708
        %712 = vset.pattern.permute.xlu0 0
        %713 = vperm.xlu0 %712, %v671
        %v714 = vpop.permute.xlu0 %713
        %717 = vset.pattern.permute.xlu0 0
        %718 = vperm.xlu0 %717, %v672
        %v719 = vpop.permute.xlu0 %718
        %722 = vset.pattern.permute.xlu0 0
        %723 = vperm.xlu0 %722, %v673
        %v724 = vpop.permute.xlu0 %723
        %727 = vset.pattern.permute.xlu0 0
        %728 = vperm.xlu0 %727, %v674
        %v729 = vpop.permute.xlu0 %728
        %732 = vset.pattern.permute.xlu0 0
        %733 = vperm.xlu0 %732, %v675
        %v734 = vpop.permute.xlu0 %733
        %737 = vset.pattern.permute.xlu0 0
        %738 = vperm.xlu0 %737, %v676
        %v739 = vpop.permute.xlu0 %738
        %742 = vset.pattern.permute.xlu0 0
        %743 = vperm.xlu0 %742, %v677
        %v744 = vpop.permute.xlu0 %743
        %747 = vset.pattern.permute.xlu0 0
        %748 = vperm.xlu0 %747, %v678
        %v749 = vpop.permute.xlu0 %748
        %752 = vset.pattern.permute.xlu0 0
        %753 = vperm.xlu0 %752, %v679
        %v754 = vpop.permute.xlu0 %753
        %757 = vset.pattern.permute.xlu0 0
        %758 = vperm.xlu0 %757, %v680
        %v759 = vpop.permute.xlu0 %758
        %v762 = vsel %vm327, %v649, 0
        %v765 = vsel %vm327, %v650, 0
        %v768 = vsel %vm327, %v651, 0
        %v771 = vsel %vm327, %v652, 0
        %v774 = vsel %vm327, %v653, 0
        %v777 = vsel %vm327, %v654, 0
        %v780 = vsel %vm327, %v655, 0
        %v783 = vsel %vm327, %v656, 0
        %v786 = vsel %vm327, %v657, 0
        %v789 = vsel %vm327, %v658, 0
        %v792 = vsel %vm327, %v659, 0
        %v795 = vsel %vm327, %v660, 0
        %v798 = vsel %vm327, %v661, 0
        %v801 = vsel %vm327, %v662, 0
        %v804 = vsel %vm327, %v663, 0
        %v807 = vsel %vm327, %v664, 0
        %809 = vmatpush.msra.mxu0 0.0
        %810 = vmatpush.msra.mxu0 0.0
        %811 = vmatpush.msra.mxu0 0.0
        %812 = vmatpush.msra.mxu0 0.0
        %813 = vmatpush.msra.mxu0 0.0
        %814 = vmatpush.msra.mxu0 0.0
        %815 = vmatpush.msra.mxu0 0.0
        %816 = vmatpush.msra.mxu0 0.0
        %817 = vmatpush.msra.mxu0 %v647
        %818 = vmatpush.msra.mxu0 %v645
        %819 = vmatpush.msra.mxu0 %v643
        %820 = vmatpush.msra.mxu0 %v641
        %821 = vmatpush.msra.mxu0 %v639
        %822 = vmatpush.msra.mxu0 %v637
        %823 = vmatpush.msra.mxu0 %v635
        %824 = vmatpush.msra.mxu0 %v633
        %825 = vmatmul.f32.gmra.mxu0 %v762
        %v826 = vpop.f32.mrf.mxu0
        %v827 = vadd.f32 %v684, %v826
        %828 = vmatmul.f32.gmra.mxu0 %v765
        %v829 = vpop.f32.mrf.mxu0
        %v830 = vadd.f32 %v689, %v829
        %831 = vmatmul.f32.gmra.mxu0 %v768
        %v832 = vpop.f32.mrf.mxu0
        %v833 = vadd.f32 %v694, %v832
        %834 = vmatmul.f32.gmra.mxu0 %v771
        %v835 = vpop.f32.mrf.mxu0
        %v836 = vadd.f32 %v699, %v835
        %837 = vmatmul.f32.gmra.mxu0 %v774
        %v838 = vpop.f32.mrf.mxu0
        %v839 = vadd.f32 %v704, %v838
        %840 = vmatmul.f32.gmra.mxu0 %v777
        %v841 = vpop.f32.mrf.mxu0
        %v842 = vadd.f32 %v709, %v841
        %843 = vmatmul.f32.gmra.mxu0 %v780
        %v844 = vpop.f32.mrf.mxu0
        %v845 = vadd.f32 %v714, %v844
        %846 = vmatmul.f32.gmra.mxu0 %v783
        %v847 = vpop.f32.mrf.mxu0
        %v848 = vadd.f32 %v719, %v847
        %849 = vmatmul.f32.gmra.mxu0 %v786
        %v850 = vpop.f32.mrf.mxu0
        %v851 = vadd.f32 %v724, %v850
        %852 = vmatmul.f32.gmra.mxu0 %v789
        %v853 = vpop.f32.mrf.mxu0
        %v854 = vadd.f32 %v729, %v853
        %855 = vmatmul.f32.gmra.mxu0 %v792
        %v856 = vpop.f32.mrf.mxu0
        %v857 = vadd.f32 %v734, %v856
        %858 = vmatmul.f32.gmra.mxu0 %v795
        %v859 = vpop.f32.mrf.mxu0
        %v860 = vadd.f32 %v739, %v859
        %861 = vmatmul.f32.gmra.mxu0 %v798
        %v862 = vpop.f32.mrf.mxu0
        %v863 = vadd.f32 %v744, %v862
        %864 = vmatmul.f32.gmra.mxu0 %v801
        %v865 = vpop.f32.mrf.mxu0
        %v866 = vadd.f32 %v749, %v865
        %867 = vmatmul.f32.gmra.mxu0 %v804
        %v868 = vpop.f32.mrf.mxu0
        %v869 = vadd.f32 %v754, %v868
        %870 = vmatmul.f32.gmra.mxu0 %v807
        %v871 = vpop.f32.mrf.mxu0
        %v872 = vadd.f32 %v759, %v871
        %873 = vdwg.mxu0
        %874 = vmatpush.msra.mxu0 0.0
        %875 = vmatpush.msra.mxu0 0.0
        %876 = vmatpush.msra.mxu0 0.0
        %877 = vmatpush.msra.mxu0 0.0
        %878 = vmatpush.msra.mxu0 0.0
        %879 = vmatpush.msra.mxu0 0.0
        %880 = vmatpush.msra.mxu0 0.0
        %881 = vmatpush.msra.mxu0 0.0
        %882 = vmatpush.msra.mxu0 %v648
        %883 = vmatpush.msra.mxu0 %v646
        %884 = vmatpush.msra.mxu0 %v644
        %885 = vmatpush.msra.mxu0 %v642
        %886 = vmatpush.msra.mxu0 %v640
        %887 = vmatpush.msra.mxu0 %v638
        %888 = vmatpush.msra.mxu0 %v636
        %889 = vmatpush.msra.mxu0 %v634
        %890 = vmatmul.f32.gmra.mxu0 %v762
        %v891 = vpop.f32.mrf.mxu0
        %v892 = vadd.f32 %v684, %v891
        %893 = vmatmul.f32.gmra.mxu0 %v765
        %v894 = vpop.f32.mrf.mxu0
        %v895 = vadd.f32 %v689, %v894
        %896 = vmatmul.f32.gmra.mxu0 %v768
        %v897 = vpop.f32.mrf.mxu0
        %v898 = vadd.f32 %v694, %v897
        %899 = vmatmul.f32.gmra.mxu0 %v771
        %v900 = vpop.f32.mrf.mxu0
        %v901 = vadd.f32 %v699, %v900
        %902 = vmatmul.f32.gmra.mxu0 %v774
        %v903 = vpop.f32.mrf.mxu0
        %v904 = vadd.f32 %v704, %v903
        %905 = vmatmul.f32.gmra.mxu0 %v777
        %v906 = vpop.f32.mrf.mxu0
        %v907 = vadd.f32 %v709, %v906
        %908 = vmatmul.f32.gmra.mxu0 %v780
        %v909 = vpop.f32.mrf.mxu0
        %v910 = vadd.f32 %v714, %v909
        %911 = vmatmul.f32.gmra.mxu0 %v783
        %v912 = vpop.f32.mrf.mxu0
        %v913 = vadd.f32 %v719, %v912
        %914 = vmatmul.f32.gmra.mxu0 %v786
        %v915 = vpop.f32.mrf.mxu0
        %v916 = vadd.f32 %v724, %v915
        %917 = vmatmul.f32.gmra.mxu0 %v789
        %v918 = vpop.f32.mrf.mxu0
        %v919 = vadd.f32 %v729, %v918
        %920 = vmatmul.f32.gmra.mxu0 %v792
        %v921 = vpop.f32.mrf.mxu0
        %v922 = vadd.f32 %v734, %v921
        %923 = vmatmul.f32.gmra.mxu0 %v795
        %v924 = vpop.f32.mrf.mxu0
        %v925 = vadd.f32 %v739, %v924
        %926 = vmatmul.f32.gmra.mxu0 %v798
        %v927 = vpop.f32.mrf.mxu0
        %v928 = vadd.f32 %v744, %v927
        %929 = vmatmul.f32.gmra.mxu0 %v801
        %v930 = vpop.f32.mrf.mxu0
        %v931 = vadd.f32 %v749, %v930
        %932 = vmatmul.f32.gmra.mxu0 %v804
        %v933 = vpop.f32.mrf.mxu0
        %v934 = vadd.f32 %v754, %v933
        %935 = vmatmul.f32.gmra.mxu0 %v807
        %v936 = vpop.f32.mrf.mxu0
        %v937 = vadd.f32 %v759, %v936
        %938 = vdwg.mxu0
        %v939 = vxor.u32 %v827, 2147483648
        %v940 = vxor.u32 %v892, 2147483648
        %v941 = vxor.u32 %v830, 2147483648
        %v942 = vxor.u32 %v895, 2147483648
        %v943 = vxor.u32 %v833, 2147483648
        %v944 = vxor.u32 %v898, 2147483648
        %v945 = vxor.u32 %v836, 2147483648
        %v946 = vxor.u32 %v901, 2147483648
        %v947 = vxor.u32 %v839, 2147483648
        %v948 = vxor.u32 %v904, 2147483648
        %v949 = vxor.u32 %v842, 2147483648
        %v950 = vxor.u32 %v907, 2147483648
        %v951 = vxor.u32 %v845, 2147483648
        %v952 = vxor.u32 %v910, 2147483648
        %v953 = vxor.u32 %v848, 2147483648
        %v954 = vxor.u32 %v913, 2147483648
        %v955 = vxor.u32 %v851, 2147483648
        %v956 = vxor.u32 %v916, 2147483648
        %v957 = vxor.u32 %v854, 2147483648
        %v958 = vxor.u32 %v919, 2147483648
        %v959 = vxor.u32 %v857, 2147483648
        %v960 = vxor.u32 %v922, 2147483648
        %v961 = vxor.u32 %v860, 2147483648
        %v962 = vxor.u32 %v925, 2147483648
        %v963 = vxor.u32 %v863, 2147483648
        %v964 = vxor.u32 %v928, 2147483648
        %v965 = vxor.u32 %v866, 2147483648
        %v966 = vxor.u32 %v931, 2147483648
        %v967 = vxor.u32 %v869, 2147483648
        %v968 = vxor.u32 %v934, 2147483648
        %v969 = vxor.u32 %v872, 2147483648
        %v970 = vxor.u32 %v937, 2147483648
        %v971 = vmul.f32 %v939, 1.442695
        %v972 = vpow.pop %v971
        %v973 = vmul.f32 %v940, 1.442695
        %v974 = vpow.pop %v973
        %v975 = vmul.f32 %v941, 1.442695
        %v976 = vpow.pop %v975
        %v977 = vmul.f32 %v942, 1.442695
        %v978 = vpow.pop %v977
        %v979 = vmul.f32 %v943, 1.442695
        %v980 = vpow.pop %v979
        %v981 = vmul.f32 %v944, 1.442695
        %v982 = vpow.pop %v981
        %v983 = vmul.f32 %v945, 1.442695
        %v984 = vpow.pop %v983
        %v985 = vmul.f32 %v946, 1.442695
        %v986 = vpow.pop %v985
        %v987 = vmul.f32 %v947, 1.442695
        %v988 = vpow.pop %v987
        %v989 = vmul.f32 %v948, 1.442695
        %v990 = vpow.pop %v989
        %v991 = vmul.f32 %v949, 1.442695
        %v992 = vpow.pop %v991
        %v993 = vmul.f32 %v950, 1.442695
        %v994 = vpow.pop %v993
        %v995 = vmul.f32 %v951, 1.442695
        %v996 = vpow.pop %v995
        %v997 = vmul.f32 %v952, 1.442695
        %v998 = vpow.pop %v997
        %v999 = vmul.f32 %v953, 1.442695
        %v1000 = vpow.pop %v999
        %v1001 = vmul.f32 %v954, 1.442695
        %v1002 = vpow.pop %v1001
        %v1003 = vmul.f32 %v955, 1.442695
        %v1004 = vpow.pop %v1003
        %v1005 = vmul.f32 %v956, 1.442695
        %v1006 = vpow.pop %v1005
        %v1007 = vmul.f32 %v957, 1.442695
        %v1008 = vpow.pop %v1007
        %v1009 = vmul.f32 %v958, 1.442695
        %v1010 = vpow.pop %v1009
        %v1011 = vmul.f32 %v959, 1.442695
        %v1012 = vpow.pop %v1011
        %v1013 = vmul.f32 %v960, 1.442695
        %v1014 = vpow.pop %v1013
        %v1015 = vmul.f32 %v961, 1.442695
        %v1016 = vpow.pop %v1015
        %v1017 = vmul.f32 %v962, 1.442695
        %v1018 = vpow.pop %v1017
        %v1019 = vmul.f32 %v963, 1.442695
        %v1020 = vpow.pop %v1019
        %v1021 = vmul.f32 %v964, 1.442695
        %v1022 = vpow.pop %v1021
        %v1023 = vmul.f32 %v965, 1.442695
        %v1024 = vpow.pop %v1023
        %v1025 = vmul.f32 %v966, 1.442695
        %v1026 = vpow.pop %v1025
        %v1027 = vmul.f32 %v967, 1.442695
        %v1028 = vpow.pop %v1027
        %v1029 = vmul.f32 %v968, 1.442695
        %v1030 = vpow.pop %v1029
        %v1031 = vmul.f32 %v969, 1.442695
        %v1032 = vpow.pop %v1031
        %v1033 = vmul.f32 %v970, 1.442695
        %v1034 = vpow.pop %v1033
        %v1035 = vadd.f32 %v972, 1.0
        %v1036 = vadd.f32 %v974, 1.0
        %v1037 = vadd.f32 %v976, 1.0
        %v1038 = vadd.f32 %v978, 1.0
        %v1039 = vadd.f32 %v980, 1.0
        %v1040 = vadd.f32 %v982, 1.0
        %v1041 = vadd.f32 %v984, 1.0
        %v1042 = vadd.f32 %v986, 1.0
        %v1043 = vadd.f32 %v988, 1.0
        %v1044 = vadd.f32 %v990, 1.0
        %v1045 = vadd.f32 %v992, 1.0
        %v1046 = vadd.f32 %v994, 1.0
        %v1047 = vadd.f32 %v996, 1.0
        %v1048 = vadd.f32 %v998, 1.0
        %v1049 = vadd.f32 %v1000, 1.0
        %v1050 = vadd.f32 %v1002, 1.0
        %v1051 = vadd.f32 %v1004, 1.0
        %v1052 = vadd.f32 %v1006, 1.0
        %v1053 = vadd.f32 %v1008, 1.0
        %v1054 = vadd.f32 %v1010, 1.0
        %v1055 = vadd.f32 %v1012, 1.0
        %v1056 = vadd.f32 %v1014, 1.0
        %v1057 = vadd.f32 %v1016, 1.0
        %v1058 = vadd.f32 %v1018, 1.0
        %v1059 = vadd.f32 %v1020, 1.0
        %v1060 = vadd.f32 %v1022, 1.0
        %v1061 = vadd.f32 %v1024, 1.0
        %v1062 = vadd.f32 %v1026, 1.0
        %v1063 = vadd.f32 %v1028, 1.0
        %v1064 = vadd.f32 %v1030, 1.0
        %v1065 = vadd.f32 %v1032, 1.0
        %v1066 = vadd.f32 %v1034, 1.0
        %v1067 = vrcp.pop %v1035
        %v1068 = vmul.f32 %v1035, %v1067
        %v1069 = vsub.f32 1.0, %v1068
        %v1070 = vmul.f32 %v1067, %v1069
        %v1071 = vadd.f32 %v1067, %v1070
        %vm1072 = vweird.f32 %v1035
        %vm1073 = vweird.f32 %v1067
        %vm1074 = vmor %vm1072, %vm1073
        %v1075 = vsel %vm1074, %v1067, %v1071
        %v1076 = vand.u32 2147483647, %v1035
        %vm1077 = vcmp.eq.f32.partialorder %v1076, 8.507059e+37
        %v1078 = vand.u32 %v1035, 2147483648
        %v1079 = vor.u32 1.1754944e-38, %v1078
        %v1080 = vsel %vm1077, %v1079, %v1075
        %v1081 = vmul.f32 1.0, %v1080
        %v1082 = vrcp.pop %v1036
        %v1083 = vmul.f32 %v1036, %v1082
        %v1084 = vsub.f32 1.0, %v1083
        %v1085 = vmul.f32 %v1082, %v1084
        %v1086 = vadd.f32 %v1082, %v1085
        %vm1087 = vweird.f32 %v1036
        %vm1088 = vweird.f32 %v1082
        %vm1089 = vmor %vm1087, %vm1088
        %v1090 = vsel %vm1089, %v1082, %v1086
        %v1091 = vand.u32 2147483647, %v1036
        %vm1092 = vcmp.eq.f32.partialorder %v1091, 8.507059e+37
        %v1093 = vand.u32 %v1036, 2147483648
        %v1094 = vor.u32 1.1754944e-38, %v1093
        %v1095 = vsel %vm1092, %v1094, %v1090
        %v1096 = vmul.f32 1.0, %v1095
        %v1097 = vrcp.pop %v1037
        %v1098 = vmul.f32 %v1037, %v1097
        %v1099 = vsub.f32 1.0, %v1098
        %v1100 = vmul.f32 %v1097, %v1099
        %v1101 = vadd.f32 %v1097, %v1100
        %vm1102 = vweird.f32 %v1037
        %vm1103 = vweird.f32 %v1097
        %vm1104 = vmor %vm1102, %vm1103
        %v1105 = vsel %vm1104, %v1097, %v1101
        %v1106 = vand.u32 2147483647, %v1037
        %vm1107 = vcmp.eq.f32.partialorder %v1106, 8.507059e+37
        %v1108 = vand.u32 %v1037, 2147483648
        %v1109 = vor.u32 1.1754944e-38, %v1108
        %v1110 = vsel %vm1107, %v1109, %v1105
        %v1111 = vmul.f32 1.0, %v1110
        %v1112 = vrcp.pop %v1038
        %v1113 = vmul.f32 %v1038, %v1112
        %v1114 = vsub.f32 1.0, %v1113
        %v1115 = vmul.f32 %v1112, %v1114
        %v1116 = vadd.f32 %v1112, %v1115
        %vm1117 = vweird.f32 %v1038
        %vm1118 = vweird.f32 %v1112
        %vm1119 = vmor %vm1117, %vm1118
        %v1120 = vsel %vm1119, %v1112, %v1116
        %v1121 = vand.u32 2147483647, %v1038
        %vm1122 = vcmp.eq.f32.partialorder %v1121, 8.507059e+37
        %v1123 = vand.u32 %v1038, 2147483648
        %v1124 = vor.u32 1.1754944e-38, %v1123
        %v1125 = vsel %vm1122, %v1124, %v1120
        %v1126 = vmul.f32 1.0, %v1125
        %v1127 = vrcp.pop %v1039
        %v1128 = vmul.f32 %v1039, %v1127
        %v1129 = vsub.f32 1.0, %v1128
        %v1130 = vmul.f32 %v1127, %v1129
        %v1131 = vadd.f32 %v1127, %v1130
        %vm1132 = vweird.f32 %v1039
        %vm1133 = vweird.f32 %v1127
        %vm1134 = vmor %vm1132, %vm1133
        %v1135 = vsel %vm1134, %v1127, %v1131
        %v1136 = vand.u32 2147483647, %v1039
        %vm1137 = vcmp.eq.f32.partialorder %v1136, 8.507059e+37
        %v1138 = vand.u32 %v1039, 2147483648
        %v1139 = vor.u32 1.1754944e-38, %v1138
        %v1140 = vsel %vm1137, %v1139, %v1135
        %v1141 = vmul.f32 1.0, %v1140
        %v1142 = vrcp.pop %v1040
        %v1143 = vmul.f32 %v1040, %v1142
        %v1144 = vsub.f32 1.0, %v1143
        %v1145 = vmul.f32 %v1142, %v1144
        %v1146 = vadd.f32 %v1142, %v1145
        %vm1147 = vweird.f32 %v1040
        %vm1148 = vweird.f32 %v1142
        %vm1149 = vmor %vm1147, %vm1148
        %v1150 = vsel %vm1149, %v1142, %v1146
        %v1151 = vand.u32 2147483647, %v1040
        %vm1152 = vcmp.eq.f32.partialorder %v1151, 8.507059e+37
        %v1153 = vand.u32 %v1040, 2147483648
        %v1154 = vor.u32 1.1754944e-38, %v1153
        %v1155 = vsel %vm1152, %v1154, %v1150
        %v1156 = vmul.f32 1.0, %v1155
        %v1157 = vrcp.pop %v1041
        %v1158 = vmul.f32 %v1041, %v1157
        %v1159 = vsub.f32 1.0, %v1158
        %v1160 = vmul.f32 %v1157, %v1159
        %v1161 = vadd.f32 %v1157, %v1160
        %vm1162 = vweird.f32 %v1041
        %vm1163 = vweird.f32 %v1157
        %vm1164 = vmor %vm1162, %vm1163
        %v1165 = vsel %vm1164, %v1157, %v1161
        %v1166 = vand.u32 2147483647, %v1041
        %vm1167 = vcmp.eq.f32.partialorder %v1166, 8.507059e+37
        %v1168 = vand.u32 %v1041, 2147483648
        %v1169 = vor.u32 1.1754944e-38, %v1168
        %v1170 = vsel %vm1167, %v1169, %v1165
        %v1171 = vmul.f32 1.0, %v1170
        %v1172 = vrcp.pop %v1042
        %v1173 = vmul.f32 %v1042, %v1172
        %v1174 = vsub.f32 1.0, %v1173
        %v1175 = vmul.f32 %v1172, %v1174
        %v1176 = vadd.f32 %v1172, %v1175
        %vm1177 = vweird.f32 %v1042
        %vm1178 = vweird.f32 %v1172
        %vm1179 = vmor %vm1177, %vm1178
        %v1180 = vsel %vm1179, %v1172, %v1176
        %v1181 = vand.u32 2147483647, %v1042
        %vm1182 = vcmp.eq.f32.partialorder %v1181, 8.507059e+37
        %v1183 = vand.u32 %v1042, 2147483648
        %v1184 = vor.u32 1.1754944e-38, %v1183
        %v1185 = vsel %vm1182, %v1184, %v1180
        %v1186 = vmul.f32 1.0, %v1185
        %v1187 = vrcp.pop %v1043
        %v1188 = vmul.f32 %v1043, %v1187
        %v1189 = vsub.f32 1.0, %v1188
        %v1190 = vmul.f32 %v1187, %v1189
        %v1191 = vadd.f32 %v1187, %v1190
        %vm1192 = vweird.f32 %v1043
        %vm1193 = vweird.f32 %v1187
        %vm1194 = vmor %vm1192, %vm1193
        %v1195 = vsel %vm1194, %v1187, %v1191
        %v1196 = vand.u32 2147483647, %v1043
        %vm1197 = vcmp.eq.f32.partialorder %v1196, 8.507059e+37
        %v1198 = vand.u32 %v1043, 2147483648
        %v1199 = vor.u32 1.1754944e-38, %v1198
        %v1200 = vsel %vm1197, %v1199, %v1195
        %v1201 = vmul.f32 1.0, %v1200
        %v1202 = vrcp.pop %v1044
        %v1203 = vmul.f32 %v1044, %v1202
        %v1204 = vsub.f32 1.0, %v1203
        %v1205 = vmul.f32 %v1202, %v1204
        %v1206 = vadd.f32 %v1202, %v1205
        %vm1207 = vweird.f32 %v1044
        %vm1208 = vweird.f32 %v1202
        %vm1209 = vmor %vm1207, %vm1208
        %v1210 = vsel %vm1209, %v1202, %v1206
        %v1211 = vand.u32 2147483647, %v1044
        %vm1212 = vcmp.eq.f32.partialorder %v1211, 8.507059e+37
        %v1213 = vand.u32 %v1044, 2147483648
        %v1214 = vor.u32 1.1754944e-38, %v1213
        %v1215 = vsel %vm1212, %v1214, %v1210
        %v1216 = vmul.f32 1.0, %v1215
        %v1217 = vrcp.pop %v1045
        %v1218 = vmul.f32 %v1045, %v1217
        %v1219 = vsub.f32 1.0, %v1218
        %v1220 = vmul.f32 %v1217, %v1219
        %v1221 = vadd.f32 %v1217, %v1220
        %vm1222 = vweird.f32 %v1045
        %vm1223 = vweird.f32 %v1217
        %vm1224 = vmor %vm1222, %vm1223
        %v1225 = vsel %vm1224, %v1217, %v1221
        %v1226 = vand.u32 2147483647, %v1045
        %vm1227 = vcmp.eq.f32.partialorder %v1226, 8.507059e+37
        %v1228 = vand.u32 %v1045, 2147483648
        %v1229 = vor.u32 1.1754944e-38, %v1228
        %v1230 = vsel %vm1227, %v1229, %v1225
        %v1231 = vmul.f32 1.0, %v1230
        %v1232 = vrcp.pop %v1046
        %v1233 = vmul.f32 %v1046, %v1232
        %v1234 = vsub.f32 1.0, %v1233
        %v1235 = vmul.f32 %v1232, %v1234
        %v1236 = vadd.f32 %v1232, %v1235
        %vm1237 = vweird.f32 %v1046
        %vm1238 = vweird.f32 %v1232
        %vm1239 = vmor %vm1237, %vm1238
        %v1240 = vsel %vm1239, %v1232, %v1236
        %v1241 = vand.u32 2147483647, %v1046
        %vm1242 = vcmp.eq.f32.partialorder %v1241, 8.507059e+37
        %v1243 = vand.u32 %v1046, 2147483648
        %v1244 = vor.u32 1.1754944e-38, %v1243
        %v1245 = vsel %vm1242, %v1244, %v1240
        %v1246 = vmul.f32 1.0, %v1245
        %v1247 = vrcp.pop %v1047
        %v1248 = vmul.f32 %v1047, %v1247
        %v1249 = vsub.f32 1.0, %v1248
        %v1250 = vmul.f32 %v1247, %v1249
        %v1251 = vadd.f32 %v1247, %v1250
        %vm1252 = vweird.f32 %v1047
        %vm1253 = vweird.f32 %v1247
        %vm1254 = vmor %vm1252, %vm1253
        %v1255 = vsel %vm1254, %v1247, %v1251
        %v1256 = vand.u32 2147483647, %v1047
        %vm1257 = vcmp.eq.f32.partialorder %v1256, 8.507059e+37
        %v1258 = vand.u32 %v1047, 2147483648
        %v1259 = vor.u32 1.1754944e-38, %v1258
        %v1260 = vsel %vm1257, %v1259, %v1255
        %v1261 = vmul.f32 1.0, %v1260
        %v1262 = vrcp.pop %v1048
        %v1263 = vmul.f32 %v1048, %v1262
        %v1264 = vsub.f32 1.0, %v1263
        %v1265 = vmul.f32 %v1262, %v1264
        %v1266 = vadd.f32 %v1262, %v1265
        %vm1267 = vweird.f32 %v1048
        %vm1268 = vweird.f32 %v1262
        %vm1269 = vmor %vm1267, %vm1268
        %v1270 = vsel %vm1269, %v1262, %v1266
        %v1271 = vand.u32 2147483647, %v1048
        %vm1272 = vcmp.eq.f32.partialorder %v1271, 8.507059e+37
        %v1273 = vand.u32 %v1048, 2147483648
        %v1274 = vor.u32 1.1754944e-38, %v1273
        %v1275 = vsel %vm1272, %v1274, %v1270
        %v1276 = vmul.f32 1.0, %v1275
        %v1277 = vrcp.pop %v1049
        %v1278 = vmul.f32 %v1049, %v1277
        %v1279 = vsub.f32 1.0, %v1278
        %v1280 = vmul.f32 %v1277, %v1279
        %v1281 = vadd.f32 %v1277, %v1280
        %vm1282 = vweird.f32 %v1049
        %vm1283 = vweird.f32 %v1277
        %vm1284 = vmor %vm1282, %vm1283
        %v1285 = vsel %vm1284, %v1277, %v1281
        %v1286 = vand.u32 2147483647, %v1049
        %vm1287 = vcmp.eq.f32.partialorder %v1286, 8.507059e+37
        %v1288 = vand.u32 %v1049, 2147483648
        %v1289 = vor.u32 1.1754944e-38, %v1288
        %v1290 = vsel %vm1287, %v1289, %v1285
        %v1291 = vmul.f32 1.0, %v1290
        %v1292 = vrcp.pop %v1050
        %v1293 = vmul.f32 %v1050, %v1292
        %v1294 = vsub.f32 1.0, %v1293
        %v1295 = vmul.f32 %v1292, %v1294
        %v1296 = vadd.f32 %v1292, %v1295
        %vm1297 = vweird.f32 %v1050
        %vm1298 = vweird.f32 %v1292
        %vm1299 = vmor %vm1297, %vm1298
        %v1300 = vsel %vm1299, %v1292, %v1296
        %v1301 = vand.u32 2147483647, %v1050
        %vm1302 = vcmp.eq.f32.partialorder %v1301, 8.507059e+37
        %v1303 = vand.u32 %v1050, 2147483648
        %v1304 = vor.u32 1.1754944e-38, %v1303
        %v1305 = vsel %vm1302, %v1304, %v1300
        %v1306 = vmul.f32 1.0, %v1305
        %v1307 = vrcp.pop %v1051
        %v1308 = vmul.f32 %v1051, %v1307
        %v1309 = vsub.f32 1.0, %v1308
        %v1310 = vmul.f32 %v1307, %v1309
        %v1311 = vadd.f32 %v1307, %v1310
        %vm1312 = vweird.f32 %v1051
        %vm1313 = vweird.f32 %v1307
        %vm1314 = vmor %vm1312, %vm1313
        %v1315 = vsel %vm1314, %v1307, %v1311
        %v1316 = vand.u32 2147483647, %v1051
        %vm1317 = vcmp.eq.f32.partialorder %v1316, 8.507059e+37
        %v1318 = vand.u32 %v1051, 2147483648
        %v1319 = vor.u32 1.1754944e-38, %v1318
        %v1320 = vsel %vm1317, %v1319, %v1315
        %v1321 = vmul.f32 1.0, %v1320
        %v1322 = vrcp.pop %v1052
        %v1323 = vmul.f32 %v1052, %v1322
        %v1324 = vsub.f32 1.0, %v1323
        %v1325 = vmul.f32 %v1322, %v1324
        %v1326 = vadd.f32 %v1322, %v1325
        %vm1327 = vweird.f32 %v1052
        %vm1328 = vweird.f32 %v1322
        %vm1329 = vmor %vm1327, %vm1328
        %v1330 = vsel %vm1329, %v1322, %v1326
        %v1331 = vand.u32 2147483647, %v1052
        %vm1332 = vcmp.eq.f32.partialorder %v1331, 8.507059e+37
        %v1333 = vand.u32 %v1052, 2147483648
        %v1334 = vor.u32 1.1754944e-38, %v1333
        %v1335 = vsel %vm1332, %v1334, %v1330
        %v1336 = vmul.f32 1.0, %v1335
        %v1337 = vrcp.pop %v1053
        %v1338 = vmul.f32 %v1053, %v1337
        %v1339 = vsub.f32 1.0, %v1338
        %v1340 = vmul.f32 %v1337, %v1339
        %v1341 = vadd.f32 %v1337, %v1340
        %vm1342 = vweird.f32 %v1053
        %vm1343 = vweird.f32 %v1337
        %vm1344 = vmor %vm1342, %vm1343
        %v1345 = vsel %vm1344, %v1337, %v1341
        %v1346 = vand.u32 2147483647, %v1053
        %vm1347 = vcmp.eq.f32.partialorder %v1346, 8.507059e+37
        %v1348 = vand.u32 %v1053, 2147483648
        %v1349 = vor.u32 1.1754944e-38, %v1348
        %v1350 = vsel %vm1347, %v1349, %v1345
        %v1351 = vmul.f32 1.0, %v1350
        %v1352 = vrcp.pop %v1054
        %v1353 = vmul.f32 %v1054, %v1352
        %v1354 = vsub.f32 1.0, %v1353
        %v1355 = vmul.f32 %v1352, %v1354
        %v1356 = vadd.f32 %v1352, %v1355
        %vm1357 = vweird.f32 %v1054
        %vm1358 = vweird.f32 %v1352
        %vm1359 = vmor %vm1357, %vm1358
        %v1360 = vsel %vm1359, %v1352, %v1356
        %v1361 = vand.u32 2147483647, %v1054
        %vm1362 = vcmp.eq.f32.partialorder %v1361, 8.507059e+37
        %v1363 = vand.u32 %v1054, 2147483648
        %v1364 = vor.u32 1.1754944e-38, %v1363
        %v1365 = vsel %vm1362, %v1364, %v1360
        %v1366 = vmul.f32 1.0, %v1365
        %v1367 = vrcp.pop %v1055
        %v1368 = vmul.f32 %v1055, %v1367
        %v1369 = vsub.f32 1.0, %v1368
        %v1370 = vmul.f32 %v1367, %v1369
        %v1371 = vadd.f32 %v1367, %v1370
        %vm1372 = vweird.f32 %v1055
        %vm1373 = vweird.f32 %v1367
        %vm1374 = vmor %vm1372, %vm1373
        %v1375 = vsel %vm1374, %v1367, %v1371
        %v1376 = vand.u32 2147483647, %v1055
        %vm1377 = vcmp.eq.f32.partialorder %v1376, 8.507059e+37
        %v1378 = vand.u32 %v1055, 2147483648
        %v1379 = vor.u32 1.1754944e-38, %v1378
        %v1380 = vsel %vm1377, %v1379, %v1375
        %v1381 = vmul.f32 1.0, %v1380
        %v1382 = vrcp.pop %v1056
        %v1383 = vmul.f32 %v1056, %v1382
        %v1384 = vsub.f32 1.0, %v1383
        %v1385 = vmul.f32 %v1382, %v1384
        %v1386 = vadd.f32 %v1382, %v1385
        %vm1387 = vweird.f32 %v1056
        %vm1388 = vweird.f32 %v1382
        %vm1389 = vmor %vm1387, %vm1388
        %v1390 = vsel %vm1389, %v1382, %v1386
        %v1391 = vand.u32 2147483647, %v1056
        %vm1392 = vcmp.eq.f32.partialorder %v1391, 8.507059e+37
        %v1393 = vand.u32 %v1056, 2147483648
        %v1394 = vor.u32 1.1754944e-38, %v1393
        %v1395 = vsel %vm1392, %v1394, %v1390
        %v1396 = vmul.f32 1.0, %v1395
        %v1397 = vrcp.pop %v1057
        %v1398 = vmul.f32 %v1057, %v1397
        %v1399 = vsub.f32 1.0, %v1398
        %v1400 = vmul.f32 %v1397, %v1399
        %v1401 = vadd.f32 %v1397, %v1400
        %vm1402 = vweird.f32 %v1057
        %vm1403 = vweird.f32 %v1397
        %vm1404 = vmor %vm1402, %vm1403
        %v1405 = vsel %vm1404, %v1397, %v1401
        %v1406 = vand.u32 2147483647, %v1057
        %vm1407 = vcmp.eq.f32.partialorder %v1406, 8.507059e+37
        %v1408 = vand.u32 %v1057, 2147483648
        %v1409 = vor.u32 1.1754944e-38, %v1408
        %v1410 = vsel %vm1407, %v1409, %v1405
        %v1411 = vmul.f32 1.0, %v1410
        %v1412 = vrcp.pop %v1058
        %v1413 = vmul.f32 %v1058, %v1412
        %v1414 = vsub.f32 1.0, %v1413
        %v1415 = vmul.f32 %v1412, %v1414
        %v1416 = vadd.f32 %v1412, %v1415
        %vm1417 = vweird.f32 %v1058
        %vm1418 = vweird.f32 %v1412
        %vm1419 = vmor %vm1417, %vm1418
        %v1420 = vsel %vm1419, %v1412, %v1416
        %v1421 = vand.u32 2147483647, %v1058
        %vm1422 = vcmp.eq.f32.partialorder %v1421, 8.507059e+37
        %v1423 = vand.u32 %v1058, 2147483648
        %v1424 = vor.u32 1.1754944e-38, %v1423
        %v1425 = vsel %vm1422, %v1424, %v1420
        %v1426 = vmul.f32 1.0, %v1425
        %v1427 = vrcp.pop %v1059
        %v1428 = vmul.f32 %v1059, %v1427
        %v1429 = vsub.f32 1.0, %v1428
        %v1430 = vmul.f32 %v1427, %v1429
        %v1431 = vadd.f32 %v1427, %v1430
        %vm1432 = vweird.f32 %v1059
        %vm1433 = vweird.f32 %v1427
        %vm1434 = vmor %vm1432, %vm1433
        %v1435 = vsel %vm1434, %v1427, %v1431
        %v1436 = vand.u32 2147483647, %v1059
        %vm1437 = vcmp.eq.f32.partialorder %v1436, 8.507059e+37
        %v1438 = vand.u32 %v1059, 2147483648
        %v1439 = vor.u32 1.1754944e-38, %v1438
        %v1440 = vsel %vm1437, %v1439, %v1435
        %v1441 = vmul.f32 1.0, %v1440
        %v1442 = vrcp.pop %v1060
        %v1443 = vmul.f32 %v1060, %v1442
        %v1444 = vsub.f32 1.0, %v1443
        %v1445 = vmul.f32 %v1442, %v1444
        %v1446 = vadd.f32 %v1442, %v1445
        %vm1447 = vweird.f32 %v1060
        %vm1448 = vweird.f32 %v1442
        %vm1449 = vmor %vm1447, %vm1448
        %v1450 = vsel %vm1449, %v1442, %v1446
        %v1451 = vand.u32 2147483647, %v1060
        %vm1452 = vcmp.eq.f32.partialorder %v1451, 8.507059e+37
        %v1453 = vand.u32 %v1060, 2147483648
        %v1454 = vor.u32 1.1754944e-38, %v1453
        %v1455 = vsel %vm1452, %v1454, %v1450
        %v1456 = vmul.f32 1.0, %v1455
        %v1457 = vrcp.pop %v1061
        %v1458 = vmul.f32 %v1061, %v1457
        %v1459 = vsub.f32 1.0, %v1458
        %v1460 = vmul.f32 %v1457, %v1459
        %v1461 = vadd.f32 %v1457, %v1460
        %vm1462 = vweird.f32 %v1061
        %vm1463 = vweird.f32 %v1457
        %vm1464 = vmor %vm1462, %vm1463
        %v1465 = vsel %vm1464, %v1457, %v1461
        %v1466 = vand.u32 2147483647, %v1061
        %vm1467 = vcmp.eq.f32.partialorder %v1466, 8.507059e+37
        %v1468 = vand.u32 %v1061, 2147483648
        %v1469 = vor.u32 1.1754944e-38, %v1468
        %v1470 = vsel %vm1467, %v1469, %v1465
        %v1471 = vmul.f32 1.0, %v1470
        %v1472 = vrcp.pop %v1062
        %v1473 = vmul.f32 %v1062, %v1472
        %v1474 = vsub.f32 1.0, %v1473
        %v1475 = vmul.f32 %v1472, %v1474
        %v1476 = vadd.f32 %v1472, %v1475
        %vm1477 = vweird.f32 %v1062
        %vm1478 = vweird.f32 %v1472
        %vm1479 = vmor %vm1477, %vm1478
        %v1480 = vsel %vm1479, %v1472, %v1476
        %v1481 = vand.u32 2147483647, %v1062
        %vm1482 = vcmp.eq.f32.partialorder %v1481, 8.507059e+37
        %v1483 = vand.u32 %v1062, 2147483648
        %v1484 = vor.u32 1.1754944e-38, %v1483
        %v1485 = vsel %vm1482, %v1484, %v1480
        %v1486 = vmul.f32 1.0, %v1485
        %v1487 = vrcp.pop %v1063
        %v1488 = vmul.f32 %v1063, %v1487
        %v1489 = vsub.f32 1.0, %v1488
        %v1490 = vmul.f32 %v1487, %v1489
        %v1491 = vadd.f32 %v1487, %v1490
        %vm1492 = vweird.f32 %v1063
        %vm1493 = vweird.f32 %v1487
        %vm1494 = vmor %vm1492, %vm1493
        %v1495 = vsel %vm1494, %v1487, %v1491
        %v1496 = vand.u32 2147483647, %v1063
        %vm1497 = vcmp.eq.f32.partialorder %v1496, 8.507059e+37
        %v1498 = vand.u32 %v1063, 2147483648
        %v1499 = vor.u32 1.1754944e-38, %v1498
        %v1500 = vsel %vm1497, %v1499, %v1495
        %v1501 = vmul.f32 1.0, %v1500
        %v1502 = vrcp.pop %v1064
        %v1503 = vmul.f32 %v1064, %v1502
        %v1504 = vsub.f32 1.0, %v1503
        %v1505 = vmul.f32 %v1502, %v1504
        %v1506 = vadd.f32 %v1502, %v1505
        %vm1507 = vweird.f32 %v1064
        %vm1508 = vweird.f32 %v1502
        %vm1509 = vmor %vm1507, %vm1508
        %v1510 = vsel %vm1509, %v1502, %v1506
        %v1511 = vand.u32 2147483647, %v1064
        %vm1512 = vcmp.eq.f32.partialorder %v1511, 8.507059e+37
        %v1513 = vand.u32 %v1064, 2147483648
        %v1514 = vor.u32 1.1754944e-38, %v1513
        %v1515 = vsel %vm1512, %v1514, %v1510
        %v1516 = vmul.f32 1.0, %v1515
        %v1517 = vrcp.pop %v1065
        %v1518 = vmul.f32 %v1065, %v1517
        %v1519 = vsub.f32 1.0, %v1518
        %v1520 = vmul.f32 %v1517, %v1519
        %v1521 = vadd.f32 %v1517, %v1520
        %vm1522 = vweird.f32 %v1065
        %vm1523 = vweird.f32 %v1517
        %vm1524 = vmor %vm1522, %vm1523
        %v1525 = vsel %vm1524, %v1517, %v1521
        %v1526 = vand.u32 2147483647, %v1065
        %vm1527 = vcmp.eq.f32.partialorder %v1526, 8.507059e+37
        %v1528 = vand.u32 %v1065, 2147483648
        %v1529 = vor.u32 1.1754944e-38, %v1528
        %v1530 = vsel %vm1527, %v1529, %v1525
        %v1531 = vmul.f32 1.0, %v1530
        %v1532 = vrcp.pop %v1066
        %v1533 = vmul.f32 %v1066, %v1532
        %v1534 = vsub.f32 1.0, %v1533
        %v1535 = vmul.f32 %v1532, %v1534
        %v1536 = vadd.f32 %v1532, %v1535
        %vm1537 = vweird.f32 %v1066
        %vm1538 = vweird.f32 %v1532
        %vm1539 = vmor %vm1537, %vm1538
        %v1540 = vsel %vm1539, %v1532, %v1536
        %v1541 = vand.u32 2147483647, %v1066
        %vm1542 = vcmp.eq.f32.partialorder %v1541, 8.507059e+37
        %v1543 = vand.u32 %v1066, 2147483648
        %v1544 = vor.u32 1.1754944e-38, %v1543
        %v1545 = vsel %vm1542, %v1544, %v1540
        %v1546 = vmul.f32 1.0, %v1545
        %v1547 = vmul.f32 %v827, %v1081
        %v1548 = vmul.f32 %v892, %v1096
        %v1549 = vmul.f32 %v830, %v1111
        %v1550 = vmul.f32 %v895, %v1126
        %v1551 = vmul.f32 %v833, %v1141
        %v1552 = vmul.f32 %v898, %v1156
        %v1553 = vmul.f32 %v836, %v1171
        %v1554 = vmul.f32 %v901, %v1186
        %v1555 = vmul.f32 %v839, %v1201
        %v1556 = vmul.f32 %v904, %v1216
        %v1557 = vmul.f32 %v842, %v1231
        %v1558 = vmul.f32 %v907, %v1246
        %v1559 = vmul.f32 %v845, %v1261
        %v1560 = vmul.f32 %v910, %v1276
        %v1561 = vmul.f32 %v848, %v1291
        %v1562 = vmul.f32 %v913, %v1306
        %v1563 = vmul.f32 %v851, %v1321
        %v1564 = vmul.f32 %v916, %v1336
        %v1565 = vmul.f32 %v854, %v1351
        %v1566 = vmul.f32 %v919, %v1366
        %v1567 = vmul.f32 %v857, %v1381
        %v1568 = vmul.f32 %v922, %v1396
        %v1569 = vmul.f32 %v860, %v1411
        %v1570 = vmul.f32 %v925, %v1426
        %v1571 = vmul.f32 %v863, %v1441
        %v1572 = vmul.f32 %v928, %v1456
        %v1573 = vmul.f32 %v866, %v1471
        %v1574 = vmul.f32 %v931, %v1486
        %v1575 = vmul.f32 %v869, %v1501
        %v1576 = vmul.f32 %v934, %v1516
        %v1577 = vmul.f32 %v872, %v1531
        %v1578 = vmul.f32 %v937, %v1546
        %v1579 = vld [vmem:[%s5] sm:$0xff]
        %v1580 = vld [vmem:[%s5 + $0x8] sm:$0xff]
        %v1581 = vld [vmem:[%s5 + $0x10] sm:$0xff]
        %v1582 = vld [vmem:[%s5 + $0x18] sm:$0xff]
        %v1583 = vld [vmem:[%s5 + $0x20] sm:$0xff]
        %v1584 = vld [vmem:[%s5 + $0x28] sm:$0xff]
        %v1585 = vld [vmem:[%s5 + $0x30] sm:$0xff]
        %v1586 = vld [vmem:[%s5 + $0x38] sm:$0xff]
        %v1587 = vld [vmem:[%s6] sm:$0xff]
        %v1588 = vld [vmem:[%s6 + $0x8] sm:$0xff]
        %v1589 = vld [vmem:[%s6 + $0x10] sm:$0xff]
        %v1590 = vld [vmem:[%s6 + $0x18] sm:$0xff]
        %v1591 = vld [vmem:[%s6 + $0x20] sm:$0xff]
        %v1592 = vld [vmem:[%s6 + $0x28] sm:$0xff]
        %v1593 = vld [vmem:[%s6 + $0x30] sm:$0xff]
        %v1594 = vld [vmem:[%s6 + $0x38] sm:$0xff]
        %1596 = vset.pattern.permute.xlu0 0
        %1597 = vperm.xlu0 %1596, %v1587
        %v1598 = vpop.permute.xlu0 %1597
        %1601 = vset.pattern.permute.xlu0 0
        %1602 = vperm.xlu0 %1601, %v1588
        %v1603 = vpop.permute.xlu0 %1602
        %1606 = vset.pattern.permute.xlu0 0
        %1607 = vperm.xlu0 %1606, %v1589
        %v1608 = vpop.permute.xlu0 %1607
        %1611 = vset.pattern.permute.xlu0 0
        %1612 = vperm.xlu0 %1611, %v1590
        %v1613 = vpop.permute.xlu0 %1612
        %1616 = vset.pattern.permute.xlu0 0
        %1617 = vperm.xlu0 %1616, %v1591
        %v1618 = vpop.permute.xlu0 %1617
        %1621 = vset.pattern.permute.xlu0 0
        %1622 = vperm.xlu0 %1621, %v1592
        %v1623 = vpop.permute.xlu0 %1622
        %1626 = vset.pattern.permute.xlu0 0
        %1627 = vperm.xlu0 %1626, %v1593
        %v1628 = vpop.permute.xlu0 %1627
        %1631 = vset.pattern.permute.xlu0 0
        %1632 = vperm.xlu0 %1631, %v1594
        %v1633 = vpop.permute.xlu0 %1632
        %1635 = vmatpush.msra.mxu0 %v1577
        %1636 = vmatpush.msra.mxu0 %v1575
        %1637 = vmatpush.msra.mxu0 %v1573
        %1638 = vmatpush.msra.mxu0 %v1571
        %1639 = vmatpush.msra.mxu0 %v1569
        %1640 = vmatpush.msra.mxu0 %v1567
        %1641 = vmatpush.msra.mxu0 %v1565
        %1642 = vmatpush.msra.mxu0 %v1563
        %1643 = vmatpush.msra.mxu0 %v1561
        %1644 = vmatpush.msra.mxu0 %v1559
        %1645 = vmatpush.msra.mxu0 %v1557
        %1646 = vmatpush.msra.mxu0 %v1555
        %1647 = vmatpush.msra.mxu0 %v1553
        %1648 = vmatpush.msra.mxu0 %v1551
        %1649 = vmatpush.msra.mxu0 %v1549
        %1650 = vmatpush.msra.mxu0 %v1547
        %1651 = vmatmul.f32.gmra.mxu0 %v1579
        %v1652 = vpop.f32.mrf.mxu0
        %v1653 = vadd.f32 %v1598, %v1652
        %1654 = vmatmul.f32.gmra.mxu0 %v1580
        %v1655 = vpop.f32.mrf.mxu0
        %v1656 = vadd.f32 %v1603, %v1655
        %1657 = vmatmul.f32.gmra.mxu0 %v1581
        %v1658 = vpop.f32.mrf.mxu0
        %v1659 = vadd.f32 %v1608, %v1658
        %1660 = vmatmul.f32.gmra.mxu0 %v1582
        %v1661 = vpop.f32.mrf.mxu0
        %v1662 = vadd.f32 %v1613, %v1661
        %1663 = vmatmul.f32.gmra.mxu0 %v1583
        %v1664 = vpop.f32.mrf.mxu0
        %v1665 = vadd.f32 %v1618, %v1664
        %1666 = vmatmul.f32.gmra.mxu0 %v1584
        %v1667 = vpop.f32.mrf.mxu0
        %v1668 = vadd.f32 %v1623, %v1667
        %1669 = vmatmul.f32.gmra.mxu0 %v1585
        %v1670 = vpop.f32.mrf.mxu0
        %v1671 = vadd.f32 %v1628, %v1670
        %1672 = vmatmul.f32.gmra.mxu0 %v1586
        %v1673 = vpop.f32.mrf.mxu0
        %v1674 = vadd.f32 %v1633, %v1673
        %1675 = vdwg.mxu0
        %1676 = vmatpush.msra.mxu0 %v1578
        %1677 = vmatpush.msra.mxu0 %v1576
        %1678 = vmatpush.msra.mxu0 %v1574
        %1679 = vmatpush.msra.mxu0 %v1572
        %1680 = vmatpush.msra.mxu0 %v1570
        %1681 = vmatpush.msra.mxu0 %v1568
        %1682 = vmatpush.msra.mxu0 %v1566
        %1683 = vmatpush.msra.mxu0 %v1564
        %1684 = vmatpush.msra.mxu0 %v1562
        %1685 = vmatpush.msra.mxu0 %v1560
        %1686 = vmatpush.msra.mxu0 %v1558
        %1687 = vmatpush.msra.mxu0 %v1556
        %1688 = vmatpush.msra.mxu0 %v1554
        %1689 = vmatpush.msra.mxu0 %v1552
        %1690 = vmatpush.msra.mxu0 %v1550
        %1691 = vmatpush.msra.mxu0 %v1548
        %1692 = vmatmul.f32.gmra.mxu0 %v1579
        %v1693 = vpop.f32.mrf.mxu0
        %v1694 = vadd.f32 %v1598, %v1693
        %1695 = vmatmul.f32.gmra.mxu0 %v1580
        %v1696 = vpop.f32.mrf.mxu0
        %v1697 = vadd.f32 %v1603, %v1696
        %1698 = vmatmul.f32.gmra.mxu0 %v1581
        %v1699 = vpop.f32.mrf.mxu0
        %v1700 = vadd.f32 %v1608, %v1699
        %1701 = vmatmul.f32.gmra.mxu0 %v1582
        %v1702 = vpop.f32.mrf.mxu0
        %v1703 = vadd.f32 %v1613, %v1702
        %1704 = vmatmul.f32.gmra.mxu0 %v1583
        %v1705 = vpop.f32.mrf.mxu0
        %v1706 = vadd.f32 %v1618, %v1705
        %1707 = vmatmul.f32.gmra.mxu0 %v1584
        %v1708 = vpop.f32.mrf.mxu0
        %v1709 = vadd.f32 %v1623, %v1708
        %1710 = vmatmul.f32.gmra.mxu0 %v1585
        %v1711 = vpop.f32.mrf.mxu0
        %v1712 = vadd.f32 %v1628, %v1711
        %1713 = vmatmul.f32.gmra.mxu0 %v1586
        %v1714 = vpop.f32.mrf.mxu0
        %v1715 = vadd.f32 %v1633, %v1714
        %1716 = vdwg.mxu0
        %v1717 = vadd.f32 %v633, %v1653
        %v1718 = vadd.f32 %v634, %v1694
        %v1719 = vadd.f32 %v635, %v1656
        %v1720 = vadd.f32 %v636, %v1697
        %v1721 = vadd.f32 %v637, %v1659
        %v1722 = vadd.f32 %v638, %v1700
        %v1723 = vadd.f32 %v639, %v1662
        %v1724 = vadd.f32 %v640, %v1703
        %v1725 = vadd.f32 %v641, %v1665
        %v1726 = vadd.f32 %v642, %v1706
        %v1727 = vadd.f32 %v643, %v1668
        %v1728 = vadd.f32 %v644, %v1709
        %v1729 = vadd.f32 %v645, %v1671
        %v1730 = vadd.f32 %v646, %v1712
        %v1731 = vadd.f32 %v647, %v1674
        %v1732 = vadd.f32 %v648, %v1715
        %1733 = vst [vmem:[%s271] sm:$0xff] %v1717
        %1734 = vst [vmem:[%s271 + $0x8] sm:$0xff] %v1718
        %1735 = vst [vmem:[%s271 + $0x10] sm:$0xff] %v1719
        %1736 = vst [vmem:[%s271 + $0x18] sm:$0xff] %v1720
        %1737 = vst [vmem:[%s271 + $0x20] sm:$0xff] %v1721
        %1738 = vst [vmem:[%s271 + $0x28] sm:$0xff] %v1722
        %1739 = vst [vmem:[%s271 + $0x30] sm:$0xff] %v1723
        %1740 = vst [vmem:[%s271 + $0x38] sm:$0xff] %v1724
        %1741 = vst [vmem:[%s271 + $0x40] sm:$0xff] %v1725
        %1742 = vst [vmem:[%s271 + $0x48] sm:$0xff] %v1726
        %1743 = vst [vmem:[%s271 + $0x50] sm:$0xff] %v1727
        %1744 = vst [vmem:[%s271 + $0x58] sm:$0xff] %v1728
        %1745 = vst [vmem:[%s271 + $0x60] sm:$0xff] %v1729
        %1746 = vst [vmem:[%s271 + $0x68] sm:$0xff] %v1730
        %1747 = vst [vmem:[%s271 + $0x70] sm:$0xff] %v1731
        %1748 = vst [vmem:[%s271 + $0x78] sm:$0xff] %v1732
        %s1749 = sand.u32 %s181, 1
        %s1750 = scalar_lea.sflag [#allocation3], %s1749
        %s1751 = sand.u32 %s181, 1
        %s1752 = smul.addr %s1751, 128
        %s1753 = scalar_lea.vmem [#allocation2], %s1752
        // Predicated region
        $region49: #{tpu_custom_call.1} parent=47 // pred_check
          %p1754 = pneg %p191
        $region50: #{tpu_custom_call.1} parent=47 // pred_check_branch
          %1756 = sbr.rel (%p1754) target = $region52
        $region51: #{tpu_custom_call.1} parent=47 // pred_region
          %1758 = vsyncadd %s1750, 0
          %s1759 = smul.addr %s21, 16
          %s1760 = smul.addr %s1759, 8
          %s1761 = scalar_lea.hbm %s7, %s1760
          %s1762 = sshll.u32 %s1753, 4
          %s1763 = int_to_ptr.vmem [resolvable:$true] %s1762
          %s1764 = sshll.u32 %s1761, 4
          %s1765 = int_to_ptr.hbm [resolvable:$true] %s1764
          %1770 = dma.vmem_to_hbm [thread:$0]  %s1763, 2048, %s1765, %s1750, 256, 256, 16
        $region52: #{tpu_custom_call.1} parent=47 // pred_fallthru
          _
      $region48: #{tpu_custom_call.1} parent=5 // pred_fallthru
        _
      %p1771 = scmp.le.s32.totalorder 2, %s16
      // Predicated region
      $region53: #{tpu_custom_call.1} parent=5 // pred_check
        %p1772 = pneg %p1771
      $region54: #{tpu_custom_call.1} parent=5 // pred_check_branch
        %1774 = sbr.rel (%p1772) target = $region56
      $region55: #{tpu_custom_call.1} parent=5 // pred_region
        %s1775 = ssub.s32 %s16, 2
        // Predicated region
        $region57: #{tpu_custom_call.1} parent=55 // pred_check
          %p1776 = pneg %p197
        $region58: #{tpu_custom_call.1} parent=55 // pred_check_branch
          %1778 = sbr.rel (%p1776) target = $region60
        $region59: #{tpu_custom_call.1} parent=55 // pred_region
          %s1779 = sand.u32 %s182, 1
          %s1780 = scalar_lea.sflag [#allocation3], %s1779
          %s1781 = sand.u32 %s182, 1
          %s1782 = smul.addr %s1781, 128
          %s1783 = scalar_lea.vmem [#allocation2], %s1782
          %1785 = dma.done %s1780, 2048
        $region60: #{tpu_custom_call.1} parent=55 // pred_fallthru
          _
      $region56: #{tpu_custom_call.1} parent=5 // pred_fallthru
        _
    $region6: #{tpu_custom_call.1} parent=1 // loop_footer
      %s20 = sadd.s32 1, %s16
    $region7: #{tpu_custom_call.1} parent=1 // loop_footer_branch
      %15 = sbr.rel target = $region3
    $region8: #{tpu_custom_call.1} parent=1 // loop_exit
      _
    %1786 = vsyncpa [#allocation3], 1
    %s1787 = scalar_lea.sflag [#allocation3], 1
    %1788 = vsyncpa %s1787, 1

</llo_original>
